<compile_context>
chip_gen: v7x
topology: tpu7x:2x2x1
jax: 0.10.0
libtpu: 0.0.40
codegen_flags: <defaults>
</compile_context>

<pallas_src>
from functools import partial

import jax
import jax.numpy as jnp
from jax.experimental import pallas as pl
from jax.experimental.pallas import tpu as pltpu


def _round_up(v, m):
    return ((v + m - 1) // m) * m


def _has_multiple_tensorcores():
    """True on chips with >1 TensorCore per device (v4, v5p, v7x)."""
    try:
        kind = jax.devices()[0].device_kind.lower()
    except Exception:
        return False
    return ("v4" in kind) or ("v5p" in kind) or ("7" in kind)


def _fused_kernel(x_ref, y_ref, wx_ref, wy_ref, seg_ref, b_ref, out_ref, *,
                  output_dim, yp, mxu_dtype, mxu_precision):
    """One batch tile of the InteractionAggregation forward.

    fx = x @ Wx : columns [o*yp, (o+1)*yp) are the bilinear x-side partials for
                  output o (zero beyond y_dim); the trailing `od` columns are w_x(x).
    fy = y @ Wy : columns [o*yp, (o+1)*yp) are y scattered into the same layout
                  (zero-padded); the trailing `od` columns are w_y(y).
    out = segment_sum(fx_bil * fy_bil) + fx_lin + fy_lin + b
    """
    od = output_dim
    nb = od * yp

    x = x_ref[...].astype(mxu_dtype)
    y = y_ref[...].astype(mxu_dtype)

    fx = jnp.dot(x, wx_ref[...], preferred_element_type=jnp.float32,
                 precision=mxu_precision)                      # (TB, nb+od) f32
    fy = jnp.dot(y, wy_ref[...], preferred_element_type=jnp.float32,
                 precision=mxu_precision)                      # (TB, nb+od) f32

    # All slices below start / end on 128-lane boundaries (nb % 128 == 0).
    prod = fx[:, :nb] * fy[:, :nb]                             # (TB, nb) f32
    lin = fx[:, nb:] + fy[:, nb:] + b_ref[...]                 # (TB, od) f32

    if od == 1:
        bil = jnp.sum(prod, axis=-1, keepdims=True)            # lane reduce (XLU)
    else:
        # Aligned segment reduce over blocks of yp lanes via a tiny matmul
        # against a one-hot selection matrix (MXU slack).
        bil = jnp.dot(prod, seg_ref[...], preferred_element_type=jnp.float32,
                      precision=mxu_precision)                 # (TB, od)

    out_ref[...] = (lin + bil).astype(out_ref.dtype)


def build_fused_params(w_x, b_x, w_y, b_y, w_xy, *, num_heads, output_dim,
                       mxu_dtype):
    """Fold all parameters into two matmul weights, a segment matrix and a bias.

    Reproduces PyTorch's .view semantics of w_xy exactly:
      coefficient of x[h,i]*y[h,j] for output o is w_xy.reshape(H,hx,od,hy)[h,i,o,j].
    Bilinear columns are laid out (o, head g, j) and zero-padded per output to
    yp = round_up(y_dim, 128) lanes so in-kernel slices stay tile aligned.
    """
    H, od = num_heads, output_dim
    x_dim = w_x.shape[1]
    y_dim = w_y.shape[1]
    hx, hy = x_dim // H, y_dim // H
    yp = _round_up(y_dim, 128)

    # Bilinear x-side projection, block-diagonal over heads.
    W4 = w_xy.astype(jnp.float32).reshape(H, hx, od, hy)              # [h,i,o,j]
    eye_h = jnp.eye(H, dtype=jnp.float32)
    Wbil = jnp.einsum('hg,hioj->hiogj', eye_h, W4).reshape(x_dim, od, y_dim)
    Wbil = jnp.pad(Wbil, ((0, 0), (0, 0), (0, yp - y_dim)))           # pad j to yp
    Wbil = Wbil.reshape(x_dim, od * yp)
    Wx = jnp.concatenate([Wbil, w_x.T.astype(jnp.float32)],
                         axis=1).astype(mxu_dtype)                    # (x_dim, od*yp+od)

    # y scatter/tile matrix: copies y into each output's padded block.
    T = jnp.pad(jnp.eye(y_dim, dtype=jnp.float32), ((0, 0), (0, yp - y_dim)))
    T = jnp.tile(T, (1, od))                                          # (y_dim, od*yp)
    Wy = jnp.concatenate([T, w_y.T.astype(jnp.float32)],
                         axis=1).astype(mxu_dtype)                    # (y_dim, od*yp+od)

    # One-hot segment-reduce matrix (used only when od > 1).
    seg = jnp.repeat(jnp.eye(od, dtype=jnp.float32), yp, axis=0)      # (od*yp, od)

    b_comb = (b_x.astype(jnp.float32) + b_y.astype(jnp.float32)).reshape(1, od)
    return Wx, Wy, seg, b_comb, yp


def interaction_aggregation(x, y, w_x, b_x, w_y, b_y, w_xy, *, num_heads,
                            output_dim, tile_b=16384, out_dtype=jnp.float32,
                            mxu_dtype=jnp.bfloat16):
    """x:(B,x_dim) y:(B,y_dim) (f32 or bf16); parameters as in the nn.Module."""
    B, x_dim = x.shape
    _, y_dim = y.shape
    od = output_dim

    # Parameter fusion (pure plumbing; can be cached across calls).
    Wx, Wy, seg, b_comb, yp = build_fused_params(
        w_x, b_x, w_y, b_y, w_xy,
        num_heads=num_heads, output_dim=od, mxu_dtype=mxu_dtype)
    n_cols = od * yp + od
    in_bytes = jnp.dtype(x.dtype).itemsize
    w_bytes = jnp.dtype(mxu_dtype).itemsize

    # Generation-aware VMEM budget (~3/4 of physical VMEM).
    vmem_cap = 64 * 1024 * 1024
    try:
        vmem_cap = int(pltpu.get_tpu_info().vmem_capacity_bytes)
    except Exception:
        pass
    budget = (3 * vmem_cap) // 4          # ~96 MiB on v5e/v6e, ~48 MiB on v7x

    def vmem_est(t, w_buffers):
        io = 2 * t * (x_dim + y_dim) * in_bytes            # x/y double-buffered DMA
        out = 2 * t * od * 4                               # output double-buffered
        w = w_buffers * ((x_dim + y_dim) * n_cols * w_bytes
                         + od * yp * od * 4 + od * 4)      # resident constants
        tmp = t * (2 * n_cols + od * yp) * 4 + t * (x_dim + y_dim) * w_bytes
        return io + out + w + tmp                          # temps NOT double-counted

    # Batch tile: multiple of 8, as large as the budget allows (8K-32K typical).
    tb = min(_round_up(B, 8), _round_up(tile_b, 8))
    while tb > 8 and vmem_est(tb, 2) > budget:
        tb = max(8, _round_up(tb // 2, 8))

    grid = (pl.cdiv(B, tb),)
    mxu_precision = (jax.lax.Precision.HIGHEST
                     if jnp.dtype(mxu_dtype) == jnp.dtype(jnp.float32) else None)
    kernel = partial(_fused_kernel, output_dim=od, yp=yp,
                     mxu_dtype=mxu_dtype, mxu_precision=mxu_precision)

    def build(core_parallel, weight_buffers):
        wkw = {} if weight_buffers is None else dict(
            pipeline_mode=pl.Buffered(weight_buffers))
        sem = pltpu.CORE_PARALLEL if core_parallel else pltpu.PARALLEL
        return pl.pallas_call(
            kernel,
            out_shape=jax.ShapeDtypeStruct((B, od), out_dtype),
            grid=grid,
            in_specs=[
                pl.BlockSpec((tb, x_dim), lambda i: (i, 0)),              # x tile
                pl.BlockSpec((tb, y_dim), lambda i: (i, 0)),              # y tile
                pl.BlockSpec((x_dim, n_cols), lambda i: (0, 0), **wkw),   # Wx resident
                pl.BlockSpec((y_dim, n_cols), lambda i: (0, 0), **wkw),   # Wy resident
                pl.BlockSpec((od * yp, od), lambda i: (0, 0), **wkw),     # seg resident
                pl.BlockSpec((1, od), lambda i: (0, 0), **wkw),           # bias resident
            ],
            out_specs=pl.BlockSpec((tb, od), lambda i: (i, 0)),
            compiler_params=pltpu.CompilerParams(
                dimension_semantics=(sem,),
                vmem_limit_bytes=int(budget),
            ),
        )

    multi_tc = _has_multiple_tensorcores()
    # Attempt the tuned variant first (dual-TC sharding on v7x, single-buffered
    # resident constants); fall back to portable settings if lowering rejects.
    attempts = [(multi_tc, 1), (multi_tc, None)]
    if multi_tc:
        attempts.append((False, None))
    last_err = None
    for core_parallel, weight_buffers in attempts:
        try:
            return build(core_parallel, weight_buffers)(x, y, Wx, Wy, seg, b_comb)
        except Exception as e:      # lowering/compile rejection of tuned options
            last_err = e
    raise last_err


def reference_forward(x, y, w_x, b_x, w_y, b_y, w_xy, *, num_heads, output_dim):
    """Pure-JAX replica of the PyTorch forward semantics (f32), for validation."""
    x = x.astype(jnp.float32)
    y = y.astype(jnp.float32)
    w_x = w_x.astype(jnp.float32)
    w_y = w_y.astype(jnp.float32)
    w_xy = w_xy.astype(jnp.float32)
    B, x_dim = x.shape
    _, y_dim = y.shape
    hx = x_dim // num_heads
    hy = y_dim // num_heads
    out = x @ w_x.T + b_x + y @ w_y.T + b_y                       # (B, od)
    head_x = x.reshape(B, num_heads, hx)
    head_y = y.reshape(B, num_heads, hy)
    W = w_xy.reshape(num_heads, hx, hy * output_dim)              # torch .view
    t = jnp.einsum('bhi,him->bhm', head_x, W)                     # (B,H,hy*od)
    t = t.reshape(B, num_heads, output_dim, hy)                   # torch .view
    xy = jnp.einsum('bhoj,bhj->bho', t, head_y)                   # (B,H,od)
    return out + xy.sum(axis=1)


def _make_params(key, x_dim, y_dim, num_heads, output_dim):
    kwx, kbx, kwy, kby, kwxy = jax.random.split(key, 5)
    hx, hy = x_dim // num_heads, y_dim // num_heads
    w_x = jax.random.normal(kwx, (output_dim, x_dim), jnp.float32) * 0.1
    b_x = jax.random.normal(kbx, (output_dim,), jnp.float32) * 0.1
    w_y = jax.random.normal(kwy, (output_dim, y_dim), jnp.float32) * 0.1
    b_y = jax.random.normal(kby, (output_dim,), jnp.float32) * 0.1
    fan_in, fan_out = num_heads * hx * hy, output_dim
    std = (2.0 / (fan_in + fan_out)) ** 0.5                       # xavier_normal_
    w_xy = jax.random.normal(kwxy, (num_heads * hx * hy, output_dim),
                             jnp.float32) * std
    return w_x, b_x, w_y, b_y, w_xy


if __name__ == "__main__":
    key = jax.random.PRNGKey(0)
    k1, k2, k3, k4, kp1, kp2 = jax.random.split(key, 6)

    # --- Config 1: FinalMLP defaults (output_dim=1, num_heads=2) ------------
    B, x_dim, y_dim, H, od = 8, 32, 32, 2, 1
    x = jax.random.normal(k1, (B, x_dim), jnp.float32)
    y = jax.random.normal(k2, (B, y_dim), jnp.float32)
    params = _make_params(kp1, x_dim, y_dim, H, od)
    ref = reference_forward(x, y, *params, num_heads=H, output_dim=od)

    # Exact-math path (f32 MXU operands, HIGHEST precision) -> tight check.
    out_f32 = jax.block_until_ready(interaction_aggregation(
        x, y, *params, num_heads=H, output_dim=od, mxu_dtype=jnp.float32))
    assert out_f32.shape == (B, od)
    assert jnp.allclose(out_f32, ref, atol=1e-4, rtol=1e-4)

    # Default fast path (bf16 MXU operands, f32 accumulation) -> loose check.
    out_bf = jax.block_until_ready(interaction_aggregation(
        x, y, *params, num_heads=H, output_dim=od))
    assert jnp.allclose(out_bf, ref, atol=6e-2, rtol=6e-2)

    # --- Config 2: output_dim>1, ragged batch (exercises padded seg reduce) --
    B2, x2, y2, H2, od2 = 20, 64, 32, 4, 3
    xb = jax.random.normal(k3, (B2, x2), jnp.float32)
    yb = jax.random.normal(k4, (B2, y2), jnp.float32)
    params2 = _make_params(kp2, x2, y2, H2, od2)
    ref2 = reference_forward(xb, yb, *params2, num_heads=H2, output_dim=od2)

    out2 = jax.block_until_ready(interaction_aggregation(
        xb, yb, *params2, num_heads=H2, output_dim=od2, mxu_dtype=jnp.float32))
    assert out2.shape == (B2, od2)
    assert jnp.allclose(out2, ref2, atol=1e-4, rtol=1e-4)

    out2_bf = jax.block_until_ready(interaction_aggregation(
        xb, yb, *params2, num_heads=H2, output_dim=od2))
    assert jnp.allclose(out2_bf, ref2, atol=6e-2, rtol=6e-2)

    # --- Config 3: bf16 activations in HBM (halves dominant input traffic) ---
    x_bf = x.astype(jnp.bfloat16)
    y_bf = y.astype(jnp.bfloat16)
    out3 = jax.block_until_ready(interaction_aggregation(
        x_bf, y_bf, *params, num_heads=H, output_dim=od))
    assert jnp.allclose(out3, ref, atol=6e-2, rtol=6e-2)

    print("KERNEL_OK")
</pallas_src>

<mosaic_0001>
module attributes {stable_mosaic.version = 11 : i64} {
  func.func @_fused_kernel(%arg0: i32, %arg1: memref<8x32xf32, #tpu.memory_space<vmem>>, %arg2: memref<8x32xf32, #tpu.memory_space<vmem>>, %arg3: memref<32x129xf32, #tpu.memory_space<vmem>>, %arg4: memref<32x129xf32, #tpu.memory_space<vmem>>, %arg5: memref<128x1xf32, #tpu.memory_space<vmem>>, %arg6: memref<1x1xf32, #tpu.memory_space<vmem>>, %arg7: memref<8x1xf32, #tpu.memory_space<vmem>>) attributes {dimension_semantics = [#tpu.dimension_semantics<parallel>], iteration_bounds = array<i64: 1>, scalar_prefetch = 0 : i64, scratch_operands = 0 : i64, tpu.core_type = #tpu.core_type<tc>, window_params = [{transform_indices = @transform_0, window_bounds = array<i64: 8, 32>}, {transform_indices = @transform_1, window_bounds = array<i64: 8, 32>}, {pipeline_mode = #tpu.pipeline_mode<synchronous>, transform_indices = @transform_2, window_bounds = array<i64: 32, 129>}, {pipeline_mode = #tpu.pipeline_mode<synchronous>, transform_indices = @transform_3, window_bounds = array<i64: 32, 129>}, {pipeline_mode = #tpu.pipeline_mode<synchronous>, transform_indices = @transform_4, window_bounds = array<i64: 128, 1>}, {pipeline_mode = #tpu.pipeline_mode<synchronous>, transform_indices = @transform_5, window_bounds = array<i64: 1, 1>}, {transform_indices = @transform_6, window_bounds = array<i64: 8, 1>}]} {
    %c0 = arith.constant 0 : index
    %c0_0 = arith.constant 0 : index
    %0 = vector.load %arg1[%c0, %c0_0] : memref<8x32xf32, #tpu.memory_space<vmem>>, vector<8x32xf32>
    %c0_1 = arith.constant 0 : index
    %c0_2 = arith.constant 0 : index
    %1 = vector.load %arg2[%c0_1, %c0_2] : memref<8x32xf32, #tpu.memory_space<vmem>>, vector<8x32xf32>
    %c0_3 = arith.constant 0 : index
    %c0_4 = arith.constant 0 : index
    %2 = vector.load %arg3[%c0_3, %c0_4] : memref<32x129xf32, #tpu.memory_space<vmem>>, vector<32x129xf32>
    %cst = arith.constant dense<0.000000e+00> : vector<8x129xf32>
    %3 = tpu.matmul %0, %2, %cst {dimension_numbers = #tpu.dot_dimension_numbers<[1], [0], [0], [1], [0, 0, 1, 1], [], []>, precision = #tpu.contract_precision<fp32>} : vector<8x32xf32>, vector<32x129xf32>, vector<8x129xf32> -> vector<8x129xf32>
    %c0_5 = arith.constant 0 : index
    %c0_6 = arith.constant 0 : index
    %4 = vector.load %arg4[%c0_5, %c0_6] : memref<32x129xf32, #tpu.memory_space<vmem>>, vector<32x129xf32>
    %cst_7 = arith.constant dense<0.000000e+00> : vector<8x129xf32>
    %5 = tpu.matmul %1, %4, %cst_7 {dimension_numbers = #tpu.dot_dimension_numbers<[1], [0], [0], [1], [0, 0, 1, 1], [], []>, precision = #tpu.contract_precision<fp32>} : vector<8x32xf32>, vector<32x129xf32>, vector<8x129xf32> -> vector<8x129xf32>
    %6 = vector.extract_strided_slice %3 {offsets = [0, 0], sizes = [8, 128], strides = [1, 1]} : vector<8x129xf32> to vector<8x128xf32>
    %7 = vector.extract_strided_slice %5 {offsets = [0, 0], sizes = [8, 128], strides = [1, 1]} : vector<8x129xf32> to vector<8x128xf32>
    %8 = arith.mulf %6, %7 : vector<8x128xf32>
    %9 = vector.extract_strided_slice %3 {offsets = [0, 128], sizes = [8, 1], strides = [1, 1]} : vector<8x129xf32> to vector<8x1xf32>
    %10 = vector.extract_strided_slice %5 {offsets = [0, 128], sizes = [8, 1], strides = [1, 1]} : vector<8x129xf32> to vector<8x1xf32>
    %11 = arith.addf %9, %10 : vector<8x1xf32>
    %c0_8 = arith.constant 0 : index
    %c0_9 = arith.constant 0 : index
    %12 = vector.load %arg6[%c0_8, %c0_9] : memref<1x1xf32, #tpu.memory_space<vmem>>, vector<1x1xf32>
    %13 = vector.broadcast %12 : vector<1x1xf32> to vector<8x1xf32>
    %14 = arith.addf %11, %13 : vector<8x1xf32>
    %cst_10 = arith.constant dense<0.000000e+00> : vector<8xf32>
    %15 = vector.multi_reduction <add>, %8, %cst_10 [1] : vector<8x128xf32> to vector<8xf32>
    %16 = vector.shape_cast %15 : vector<8xf32> to vector<8x1xf32>
    %17 = arith.addf %14, %16 : vector<8x1xf32>
    %c0_11 = arith.constant 0 : index
    %c0_12 = arith.constant 0 : index
    %18 = vector.load %arg7[%c0_11, %c0_12] : memref<8x1xf32, #tpu.memory_space<vmem>>, vector<8x1xf32>
    tpu.vector_store %arg7[%c0_11, %c0_12], %17 {strides = array<i32>} : memref<8x1xf32, #tpu.memory_space<vmem>>, vector<8x1xf32>,
    return
  }
  func.func @transform_0(%arg0: i32) -> (i32, i32) {
    %c0_i32 = arith.constant 0 : i32
    %c0_i32_0 = arith.constant 0 : i32
    return %arg0, %c0_i32 : i32, i32
  }
  func.func @transform_1(%arg0: i32) -> (i32, i32) {
    %c0_i32 = arith.constant 0 : i32
    %c0_i32_0 = arith.constant 0 : i32
    return %arg0, %c0_i32 : i32, i32
  }
  func.func @transform_2(%arg0: i32) -> (i32, i32) {
    %c0_i32 = arith.constant 0 : i32
    %c0_i32_0 = arith.constant 0 : i32
    %c0_i32_1 = arith.constant 0 : i32
    return %c0_i32, %c0_i32_0 : i32, i32
  }
  func.func @transform_3(%arg0: i32) -> (i32, i32) {
    %c0_i32 = arith.constant 0 : i32
    %c0_i32_0 = arith.constant 0 : i32
    %c0_i32_1 = arith.constant 0 : i32
    return %c0_i32, %c0_i32_0 : i32, i32
  }
  func.func @transform_4(%arg0: i32) -> (i32, i32) {
    %c0_i32 = arith.constant 0 : i32
    %c0_i32_0 = arith.constant 0 : i32
    %c0_i32_1 = arith.constant 0 : i32
    return %c0_i32, %c0_i32_0 : i32, i32
  }
  func.func @transform_5(%arg0: i32) -> (i32, i32) {
    %c0_i32 = arith.constant 0 : i32
    %c0_i32_0 = arith.constant 0 : i32
    %c0_i32_1 = arith.constant 0 : i32
    return %c0_i32, %c0_i32_0 : i32, i32
  }
  func.func @transform_6(%arg0: i32) -> (i32, i32) {
    %c0_i32 = arith.constant 0 : i32
    %c0_i32_0 = arith.constant 0 : i32
    return %arg0, %c0_i32 : i32, i32
  }
}

module attributes {stable_mosaic.version = 11 : i64} {
  func.func @_fused_kernel(%arg0: i32, %arg1: memref<8x32xf32, #tpu.memory_space<vmem>>, %arg2: memref<8x32xf32, #tpu.memory_space<vmem>>, %arg3: memref<32x129xf32, #tpu.memory_space<vmem>>, %arg4: memref<32x129xf32, #tpu.memory_space<vmem>>, %arg5: memref<128x1xf32, #tpu.memory_space<vmem>>, %arg6: memref<1x1xf32, #tpu.memory_space<vmem>>, %arg7: memref<8x1xf32, #tpu.memory_space<vmem>>) attributes {dimension_semantics = [#tpu.dimension_semantics<parallel>], iteration_bounds = array<i64: 1>, scalar_prefetch = 0 : i64, scratch_operands = 0 : i64, tpu.core_type = #tpu.core_type<tc>, window_params = [{transform_indices = @transform_0, window_bounds = array<i64: 8, 32>}, {transform_indices = @transform_1, window_bounds = array<i64: 8, 32>}, {pipeline_mode = #tpu.pipeline_mode<synchronous>, transform_indices = @transform_2, window_bounds = array<i64: 32, 129>}, {pipeline_mode = #tpu.pipeline_mode<synchronous>, transform_indices = @transform_3, window_bounds = array<i64: 32, 129>}, {pipeline_mode = #tpu.pipeline_mode<synchronous>, transform_indices = @transform_4, window_bounds = array<i64: 128, 1>}, {pipeline_mode = #tpu.pipeline_mode<synchronous>, transform_indices = @transform_5, window_bounds = array<i64: 1, 1>}, {transform_indices = @transform_6, window_bounds = array<i64: 8, 1>}]} {
    %c0 = arith.constant 0 : index
    %c0_0 = arith.constant 0 : index
    %0 = vector.load %arg1[%c0, %c0_0] : memref<8x32xf32, #tpu.memory_space<vmem>>, vector<8x32xf32>
    %c0_1 = arith.constant 0 : index
    %c0_2 = arith.constant 0 : index
    %1 = vector.load %arg2[%c0_1, %c0_2] : memref<8x32xf32, #tpu.memory_space<vmem>>, vector<8x32xf32>
    %c0_3 = arith.constant 0 : index
    %c0_4 = arith.constant 0 : index
    %2 = vector.load %arg3[%c0_3, %c0_4] : memref<32x129xf32, #tpu.memory_space<vmem>>, vector<32x129xf32>
    %cst = arith.constant dense<0.000000e+00> : vector<8x129xf32>
    %3 = tpu.matmul %0, %2, %cst {dimension_numbers = #tpu.dot_dimension_numbers<[1], [0], [0], [1], [0, 0, 1, 1], [], []>, precision = #tpu.contract_precision<fp32>} : vector<8x32xf32>, vector<32x129xf32>, vector<8x129xf32> -> vector<8x129xf32>
    %c0_5 = arith.constant 0 : index
    %c0_6 = arith.constant 0 : index
    %4 = vector.load %arg4[%c0_5, %c0_6] : memref<32x129xf32, #tpu.memory_space<vmem>>, vector<32x129xf32>
    %cst_7 = arith.constant dense<0.000000e+00> : vector<8x129xf32>
    %5 = tpu.matmul %1, %4, %cst_7 {dimension_numbers = #tpu.dot_dimension_numbers<[1], [0], [0], [1], [0, 0, 1, 1], [], []>, precision = #tpu.contract_precision<fp32>} : vector<8x32xf32>, vector<32x129xf32>, vector<8x129xf32> -> vector<8x129xf32>
    %6 = vector.extract_strided_slice %3 {offsets = [0, 0], sizes = [8, 128], strides = [1, 1]} : vector<8x129xf32> to vector<8x128xf32>
    %7 = vector.extract_strided_slice %5 {offsets = [0, 0], sizes = [8, 128], strides = [1, 1]} : vector<8x129xf32> to vector<8x128xf32>
    %8 = arith.mulf %6, %7 : vector<8x128xf32>
    %9 = vector.extract_strided_slice %3 {offsets = [0, 128], sizes = [8, 1], strides = [1, 1]} : vector<8x129xf32> to vector<8x1xf32>
    %10 = vector.extract_strided_slice %5 {offsets = [0, 128], sizes = [8, 1], strides = [1, 1]} : vector<8x129xf32> to vector<8x1xf32>
    %11 = arith.addf %9, %10 : vector<8x1xf32>
    %c0_8 = arith.constant 0 : index
    %c0_9 = arith.constant 0 : index
    %12 = vector.load %arg6[%c0_8, %c0_9] : memref<1x1xf32, #tpu.memory_space<vmem>>, vector<1x1xf32>
    %13 = vector.broadcast %12 : vector<1x1xf32> to vector<8x1xf32>
    %14 = arith.addf %11, %13 : vector<8x1xf32>
    %cst_10 = arith.constant dense<0.000000e+00> : vector<8xf32>
    %15 = vector.multi_reduction <add>, %8, %cst_10 [1] : vector<8x128xf32> to vector<8xf32>
    %16 = vector.shape_cast %15 : vector<8xf32> to vector<8x1xf32>
    %17 = arith.addf %14, %16 : vector<8x1xf32>
    %c0_11 = arith.constant 0 : index
    %c0_12 = arith.constant 0 : index
    %18 = vector.load %arg7[%c0_11, %c0_12] : memref<8x1xf32, #tpu.memory_space<vmem>>, vector<8x1xf32>
    tpu.vector_store %arg7[%c0_11, %c0_12], %17 {strides = array<i32>} : memref<8x1xf32, #tpu.memory_space<vmem>>, vector<8x1xf32>,
    return
  }
  func.func @transform_0(%arg0: i32) -> (i32, i32) {
    %c0_i32 = arith.constant 0 : i32
    %c0_i32_0 = arith.constant 0 : i32
    return %arg0, %c0_i32 : i32, i32
  }
  func.func @transform_1(%arg0: i32) -> (i32, i32) {
    %c0_i32 = arith.constant 0 : i32
    %c0_i32_0 = arith.constant 0 : i32
    return %arg0, %c0_i32 : i32, i32
  }
  func.func @transform_2(%arg0: i32) -> (i32, i32) {
    %c0_i32 = arith.constant 0 : i32
    %c0_i32_0 = arith.constant 0 : i32
    %c0_i32_1 = arith.constant 0 : i32
    return %c0_i32, %c0_i32_0 : i32, i32
  }
  func.func @transform_3(%arg0: i32) -> (i32, i32) {
    %c0_i32 = arith.constant 0 : i32
    %c0_i32_0 = arith.constant 0 : i32
    %c0_i32_1 = arith.constant 0 : i32
    return %c0_i32, %c0_i32_0 : i32, i32
  }
  func.func @transform_4(%arg0: i32) -> (i32, i32) {
    %c0_i32 = arith.constant 0 : i32
    %c0_i32_0 = arith.constant 0 : i32
    %c0_i32_1 = arith.constant 0 : i32
    return %c0_i32, %c0_i32_0 : i32, i32
  }
  func.func @transform_5(%arg0: i32) -> (i32, i32) {
    %c0_i32 = arith.constant 0 : i32
    %c0_i32_0 = arith.constant 0 : i32
    %c0_i32_1 = arith.constant 0 : i32
    return %c0_i32, %c0_i32_0 : i32, i32
  }
  func.func @transform_6(%arg0: i32) -> (i32, i32) {
    %c0_i32 = arith.constant 0 : i32
    %c0_i32_0 = arith.constant 0 : i32
    return %arg0, %c0_i32 : i32, i32
  }
}

</mosaic_0001>

<llo_original>
// kernel: tpu_custom_call.1
$region0: #{tpu_custom_call.1}
  #allocation0 [shape = 'u32[]', space=smem, size = 0x4, offset = 0x4, fixed_abs, tag = 'smem constant byte address 0x4 - core index']
  #allocation1 [shape = 'u32[144,128]{1,0:T(1,128)}', space=vmem, size = 0x12000, scoped, tag = 'internal scratch']
  #allocation2 [shape = 'f32[1,1]{1,0:T(1,128)S(1)}', space=vmem, size = 0x200, scoped, tag = 'scoped memory for tpu_custom_call.1']
  %s0 = inlined_call_operand.hbm [shape: f32[8,32], index: 0, kind: input, shape index: {}]
  %s1 = inlined_call_operand.vmem [shape: f32[8,32], index: 1, kind: input, shape index: {}]
  %s2 = inlined_call_operand.vmem [shape: f32[32,129], index: 2, kind: input, shape index: {}]
  %s3 = inlined_call_operand.vmem [shape: f32[32,129], index: 3, kind: input, shape index: {}]
  %s4 = inlined_call_operand.vmem [shape: f32[128,1], index: 4, kind: input, shape index: {}]
  %s5 = inlined_call_operand.<no memory space> [shape: f32[1,1], index: 5, kind: input, shape index: {}]
  %s6 = inlined_call_operand.vmem [shape: f32[8,1], index: 6, kind: output, shape index: {}]
  %s7 = sld [smem:[#allocation0]]
  $region38: #{tpu_custom_call.1} parent=0
    _
  %s9 = ssub.s32 1, %s7
  %s10 = scalar_select 0, %s9, %s7
  %v11 = vstv %s5
  %12 = vst [vmem:[#allocation2] sm:$0x1] %v11
  $region1: #{tpu_custom_call.1} parent=0
    #allocation3 [shape = 'u8[4096]{0}', space=vmem, size = 0x1000, scoped, tag = 'input window, operand 0, single buffered']
    #allocation4 [shape = 's32[1]{0}', space=sflag, size = 0x4, scoped, tag = 'scoped memory for tpu_custom_call.1']
    %13 = vsyncpa [#allocation4], 0
    // Predicated region
    $region2: #{tpu_custom_call.1} parent=1 // pred_check
      _
    $region3: #{tpu_custom_call.1} parent=1 // pred_check_branch
      %15 = sbr.rel (0) target = $region5
    $region4: #{tpu_custom_call.1} parent=1 // pred_region
      %s17 = ssub.s32 128, 128
      %18 = vsyncadd [#allocation4], %s17
      %s20 = sshll.u32 [#allocation3], 4
      %s21 = int_to_ptr.vmem [resolvable:$true] %s20
      %23 = dma.hbm_to_vmem [thread:$0]  %s0, 128, %s21, [#allocation4]
    $region5: #{tpu_custom_call.1} parent=1 // pred_fallthru
      _
    // Predicated region
    $region6: #{tpu_custom_call.1} parent=1 // pred_check
      _
    $region7: #{tpu_custom_call.1} parent=1 // pred_check_branch
      %25 = sbr.rel (0) target = $region9
    $region8: #{tpu_custom_call.1} parent=1 // pred_region
      _
    $region9: #{tpu_custom_call.1} parent=1 // pred_fallthru
      _
    // Predicated region
    $region10: #{tpu_custom_call.1} parent=1 // pred_check
      _
    $region11: #{tpu_custom_call.1} parent=1 // pred_check_branch
      %27 = sbr.rel (0) target = $region13
    $region12: #{tpu_custom_call.1} parent=1 // pred_region
      _
    $region13: #{tpu_custom_call.1} parent=1 // pred_fallthru
      _
    // Predicated region
    $region14: #{tpu_custom_call.1} parent=1 // pred_check
      _
    $region15: #{tpu_custom_call.1} parent=1 // pred_check_branch
      %29 = sbr.rel (0) target = $region17
    $region16: #{tpu_custom_call.1} parent=1 // pred_region
      _
    $region17: #{tpu_custom_call.1} parent=1 // pred_fallthru
      _
    // Predicated region
    $region18: #{tpu_custom_call.1} parent=1 // pred_check
      _
    $region19: #{tpu_custom_call.1} parent=1 // pred_check_branch
      %31 = sbr.rel (0) target = $region21
    $region20: #{tpu_custom_call.1} parent=1 // pred_region
      _
    $region21: #{tpu_custom_call.1} parent=1 // pred_fallthru
      _
    // Predicated region
    $region22: #{tpu_custom_call.1} parent=1 // pred_check
      _
    $region23: #{tpu_custom_call.1} parent=1 // pred_check_branch
      %33 = sbr.rel (0) target = $region25
    $region24: #{tpu_custom_call.1} parent=1 // pred_region
      _
    $region25: #{tpu_custom_call.1} parent=1 // pred_fallthru
      _
    // Predicated region
    $region26: #{tpu_custom_call.1} parent=1 // pred_check
      _
    $region27: #{tpu_custom_call.1} parent=1 // pred_check_branch
      %35 = sbr.rel (0) target = $region29
    $region28: #{tpu_custom_call.1} parent=1 // pred_region
      %36 = dma.done [#allocation4], 128
    $region29: #{tpu_custom_call.1} parent=1 // pred_fallthru
      _
    %v37 = vld [vmem:[#allocation3] sm:$0xff]
    %v38 = vld [vmem:[%s1] sm:$0xff]
    %v39 = vld [vmem:[%s2] sm:$0xff]
    %v40 = vld [vmem:[%s2 + $0x8] sm:$0xff]
    %v41 = vld [vmem:[%s2 + $0x10] sm:$0xff]
    %v42 = vld [vmem:[%s2 + $0x18] sm:$0xff]
    %v43 = vld [vmem:[%s2 + $0x20] sm:$0xff]
    %v44 = vld [vmem:[%s2 + $0x28] sm:$0xff]
    %v45 = vld [vmem:[%s2 + $0x30] sm:$0xff]
    %v46 = vld [vmem:[%s2 + $0x38] sm:$0xff]
    %vm47 = vcmask 261120
    %v49 = vsel %vm47, %v37, 0
    %v51 = vand.u32 %v40, 4294901760
    %52 = vmatprep.subr.mxu0 %v51
    %v53 = vand.u32 %v39, 4294901760
    %54 = vmatpush1.msra.mxu0 %v53
    %v55 = vand.u32 %v42, 4294901760
    %56 = vmatprep.subr.mxu0 %v55
    %v57 = vand.u32 %v41, 4294901760
    %58 = vmatpush1.msra.mxu0 %v57
    %v59 = vand.u32 %v44, 4294901760
    %60 = vmatprep.subr.mxu0 %v59
    %v61 = vand.u32 %v43, 4294901760
    %62 = vmatpush1.msra.mxu0 %v61
    %v63 = vand.u32 %v46, 4294901760
    %64 = vmatprep.subr.mxu0 %v63
    %v65 = vand.u32 %v45, 4294901760
    %66 = vmatpush1.msra.mxu0 %v65
    %67 = vmatprep.subr.mxu0 0.0
    %68 = vmatpush1.msra.mxu0 0.0
    %69 = vmatprep.subr.mxu0 0.0
    %70 = vmatpush1.msra.mxu0 0.0
    %71 = vmatprep.subr.mxu0 0.0
    %72 = vmatpush1.msra.mxu0 0.0
    %73 = vmatprep.subr.mxu0 0.0
    %74 = vmatpush1.msra.mxu0 0.0
    %75 = vmatprep.subr.mxu0 0.0
    %76 = vmatpush1.msra.mxu0 0.0
    %77 = vmatprep.subr.mxu0 0.0
    %78 = vmatpush1.msra.mxu0 0.0
    %79 = vmatprep.subr.mxu0 0.0
    %80 = vmatpush1.msra.mxu0 0.0
    %81 = vmatprep.subr.mxu0 0.0
    %82 = vmatpush1.msra.mxu0 0.0
    %83 = vmatprep.subr.mxu0 0.0
    %84 = vmatpush1.msra.mxu0 0.0
    %85 = vmatprep.subr.mxu0 0.0
    %86 = vmatpush1.msra.mxu0 0.0
    %87 = vmatprep.subr.mxu0 0.0
    %88 = vmatpush1.msra.mxu0 0.0
    %89 = vmatprep.subr.mxu0 0.0
    %90 = vmatpush1.msra.mxu0 0.0
    %91 = vmatprep.subr.mxu0 0.0
    %92 = vmatpush1.msra.mxu0 0.0
    %93 = vmatprep.subr.mxu0 0.0
    %94 = vmatpush1.msra.mxu0 0.0
    %95 = vmatprep.subr.mxu0 0.0
    %96 = vmatpush1.msra.mxu0 0.0
    %97 = vmatprep.subr.mxu0 0.0
    %98 = vmatpush1.msra.mxu0 0.0
    %99 = vmatprep.subr.mxu0 0.0
    %100 = vmatpush1.msra.mxu0 0.0
    %101 = vmatprep.subr.mxu0 0.0
    %102 = vmatpush1.msra.mxu0 0.0
    %103 = vmatprep.subr.mxu0 0.0
    %104 = vmatpush1.msra.mxu0 0.0
    %105 = vmatprep.subr.mxu0 0.0
    %106 = vmatpush1.msra.mxu0 0.0
    %107 = vmatprep.subr.mxu0 0.0
    %108 = vmatpush1.msra.mxu0 0.0
    %109 = vmatprep.subr.mxu0 0.0
    %110 = vmatpush1.msra.mxu0 0.0
    %111 = vmatprep.subr.mxu0 0.0
    %112 = vmatpush1.msra.mxu0 0.0
    %113 = vmatprep.subr.mxu0 0.0
    %114 = vmatpush1.msra.mxu0 0.0
    %115 = vmatprep.subr.mxu0 0.0
    %116 = vmatpush1.msra.mxu0 0.0
    %117 = vmatprep.subr.mxu0 0.0
    %118 = vmatpush1.msra.mxu0 0.0
    %119 = vmatprep.subr.mxu0 0.0
    %120 = vmatpush1.msra.mxu0 0.0
    %121 = vmatprep.subr.mxu0 0.0
    %122 = vmatpush1.msra.mxu0 0.0
    %123 = vmatprep.mubr.f32.mxu0 0.0
    %v124 = vand.u32 %v49, 4294901760
    %v125 = vsub.f32 %v49, %v124
    %v126 = vand.u32 %v125, 4294901760
    %v127 = vsub.f32 %v125, %v126
    %v128 = vand.u32 %v127, 4294901760
    %129 = vmatmul.mubr.f32.gmra.mrb[0].mxu0 %v128
    %v130 = vpop.f32.mrb[0].mxu0
    %v131 = vadd.f32 0.0, %v130
    %v132 = vpop.f32.mrb[0].mxu0
    %v133 = vadd.f32 0.0, %v132
    %134 = vdwg.mxu0
    %v135 = vand.u32 %v40, 4294901760
    %v136 = vsub.f32 %v40, %v135
    %v137 = vand.u32 %v136, 4294901760
    %v138 = vsub.f32 %v136, %v137
    %v139 = vand.u32 %v138, 4294901760
    %140 = vmatprep.subr.mxu0 %v139
    %v141 = vand.u32 %v39, 4294901760
    %v142 = vsub.f32 %v39, %v141
    %v143 = vand.u32 %v142, 4294901760
    %v144 = vsub.f32 %v142, %v143
    %v145 = vand.u32 %v144, 4294901760
    %146 = vmatpush1.msra.mxu0 %v145
    %v147 = vand.u32 %v42, 4294901760
    %v148 = vsub.f32 %v42, %v147
    %v149 = vand.u32 %v148, 4294901760
    %v150 = vsub.f32 %v148, %v149
    %v151 = vand.u32 %v150, 4294901760
    %152 = vmatprep.subr.mxu0 %v151
    %v153 = vand.u32 %v41, 4294901760
    %v154 = vsub.f32 %v41, %v153
    %v155 = vand.u32 %v154, 4294901760
    %v156 = vsub.f32 %v154, %v155
    %v157 = vand.u32 %v156, 4294901760
    %158 = vmatpush1.msra.mxu0 %v157
    %v159 = vand.u32 %v44, 4294901760
    %v160 = vsub.f32 %v44, %v159
    %v161 = vand.u32 %v160, 4294901760
    %v162 = vsub.f32 %v160, %v161
    %v163 = vand.u32 %v162, 4294901760
    %164 = vmatprep.subr.mxu0 %v163
    %v165 = vand.u32 %v43, 4294901760
    %v166 = vsub.f32 %v43, %v165
    %v167 = vand.u32 %v166, 4294901760
    %v168 = vsub.f32 %v166, %v167
    %v169 = vand.u32 %v168, 4294901760
    %170 = vmatpush1.msra.mxu0 %v169
    %v171 = vand.u32 %v46, 4294901760
    %v172 = vsub.f32 %v46, %v171
    %v173 = vand.u32 %v172, 4294901760
    %v174 = vsub.f32 %v172, %v173
    %v175 = vand.u32 %v174, 4294901760
    %176 = vmatprep.subr.mxu0 %v175
    %v177 = vand.u32 %v45, 4294901760
    %v178 = vsub.f32 %v45, %v177
    %v179 = vand.u32 %v178, 4294901760
    %v180 = vsub.f32 %v178, %v179
    %v181 = vand.u32 %v180, 4294901760
    %182 = vmatpush1.msra.mxu0 %v181
    %183 = vmatprep.subr.mxu0 0.0
    %184 = vmatpush1.msra.mxu0 0.0
    %185 = vmatprep.subr.mxu0 0.0
    %186 = vmatpush1.msra.mxu0 0.0
    %187 = vmatprep.subr.mxu0 0.0
    %188 = vmatpush1.msra.mxu0 0.0
    %189 = vmatprep.subr.mxu0 0.0
    %190 = vmatpush1.msra.mxu0 0.0
    %191 = vmatprep.subr.mxu0 0.0
    %192 = vmatpush1.msra.mxu0 0.0
    %193 = vmatprep.subr.mxu0 0.0
    %194 = vmatpush1.msra.mxu0 0.0
    %195 = vmatprep.subr.mxu0 0.0
    %196 = vmatpush1.msra.mxu0 0.0
    %197 = vmatprep.subr.mxu0 0.0
    %198 = vmatpush1.msra.mxu0 0.0
    %199 = vmatprep.subr.mxu0 0.0
    %200 = vmatpush1.msra.mxu0 0.0
    %201 = vmatprep.subr.mxu0 0.0
    %202 = vmatpush1.msra.mxu0 0.0
    %203 = vmatprep.subr.mxu0 0.0
    %204 = vmatpush1.msra.mxu0 0.0
    %205 = vmatprep.subr.mxu0 0.0
    %206 = vmatpush1.msra.mxu0 0.0
    %207 = vmatprep.subr.mxu0 0.0
    %208 = vmatpush1.msra.mxu0 0.0
    %209 = vmatprep.subr.mxu0 0.0
    %210 = vmatpush1.msra.mxu0 0.0
    %211 = vmatprep.subr.mxu0 0.0
    %212 = vmatpush1.msra.mxu0 0.0
    %213 = vmatprep.subr.mxu0 0.0
    %214 = vmatpush1.msra.mxu0 0.0
    %215 = vmatprep.subr.mxu0 0.0
    %216 = vmatpush1.msra.mxu0 0.0
    %217 = vmatprep.subr.mxu0 0.0
    %218 = vmatpush1.msra.mxu0 0.0
    %219 = vmatprep.subr.mxu0 0.0
    %220 = vmatpush1.msra.mxu0 0.0
    %221 = vmatprep.subr.mxu0 0.0
    %222 = vmatpush1.msra.mxu0 0.0
    %223 = vmatprep.subr.mxu0 0.0
    %224 = vmatpush1.msra.mxu0 0.0
    %225 = vmatprep.subr.mxu0 0.0
    %226 = vmatpush1.msra.mxu0 0.0
    %227 = vmatprep.subr.mxu0 0.0
    %228 = vmatpush1.msra.mxu0 0.0
    %229 = vmatprep.subr.mxu0 0.0
    %230 = vmatpush1.msra.mxu0 0.0
    %231 = vmatprep.subr.mxu0 0.0
    %232 = vmatpush1.msra.mxu0 0.0
    %233 = vmatprep.subr.mxu0 0.0
    %234 = vmatpush1.msra.mxu0 0.0
    %235 = vmatprep.subr.mxu0 0.0
    %236 = vmatpush1.msra.mxu0 0.0
    %237 = vmatprep.subr.mxu0 0.0
    %238 = vmatpush1.msra.mxu0 0.0
    %239 = vmatprep.mubr.f32.mxu0 0.0
    %v240 = vand.u32 %v49, 4294901760
    %241 = vmatmul.mubr.f32.gmra.mrb[0].mxu0 %v240
    %v242 = vpop.f32.mrb[0].mxu0
    %v243 = vadd.f32 %v131, %v242
    %v244 = vpop.f32.mrb[0].mxu0
    %v245 = vadd.f32 %v133, %v244
    %246 = vdwg.mxu0
    %v247 = vand.u32 %v40, 4294901760
    %v248 = vsub.f32 %v40, %v247
    %249 = vmatprep.subr.mxu0 %v248
    %v250 = vand.u32 %v39, 4294901760
    %v251 = vsub.f32 %v39, %v250
    %252 = vmatpush1.msra.mxu0 %v251
    %v253 = vand.u32 %v42, 4294901760
    %v254 = vsub.f32 %v42, %v253
    %255 = vmatprep.subr.mxu0 %v254
    %v256 = vand.u32 %v41, 4294901760
    %v257 = vsub.f32 %v41, %v256
    %258 = vmatpush1.msra.mxu0 %v257
    %v259 = vand.u32 %v44, 4294901760
    %v260 = vsub.f32 %v44, %v259
    %261 = vmatprep.subr.mxu0 %v260
    %v262 = vand.u32 %v43, 4294901760
    %v263 = vsub.f32 %v43, %v262
    %264 = vmatpush1.msra.mxu0 %v263
    %v265 = vand.u32 %v46, 4294901760
    %v266 = vsub.f32 %v46, %v265
    %267 = vmatprep.subr.mxu0 %v266
    %v268 = vand.u32 %v45, 4294901760
    %v269 = vsub.f32 %v45, %v268
    %270 = vmatpush1.msra.mxu0 %v269
    %271 = vmatprep.subr.mxu0 0.0
    %272 = vmatpush1.msra.mxu0 0.0
    %273 = vmatprep.subr.mxu0 0.0
    %274 = vmatpush1.msra.mxu0 0.0
    %275 = vmatprep.subr.mxu0 0.0
    %276 = vmatpush1.msra.mxu0 0.0
    %277 = vmatprep.subr.mxu0 0.0
    %278 = vmatpush1.msra.mxu0 0.0
    %279 = vmatprep.subr.mxu0 0.0
    %280 = vmatpush1.msra.mxu0 0.0
    %281 = vmatprep.subr.mxu0 0.0
    %282 = vmatpush1.msra.mxu0 0.0
    %283 = vmatprep.subr.mxu0 0.0
    %284 = vmatpush1.msra.mxu0 0.0
    %285 = vmatprep.subr.mxu0 0.0
    %286 = vmatpush1.msra.mxu0 0.0
    %287 = vmatprep.subr.mxu0 0.0
    %288 = vmatpush1.msra.mxu0 0.0
    %289 = vmatprep.subr.mxu0 0.0
    %290 = vmatpush1.msra.mxu0 0.0
    %291 = vmatprep.subr.mxu0 0.0
    %292 = vmatpush1.msra.mxu0 0.0
    %293 = vmatprep.subr.mxu0 0.0
    %294 = vmatpush1.msra.mxu0 0.0
    %295 = vmatprep.subr.mxu0 0.0
    %296 = vmatpush1.msra.mxu0 0.0
    %297 = vmatprep.subr.mxu0 0.0
    %298 = vmatpush1.msra.mxu0 0.0
    %299 = vmatprep.subr.mxu0 0.0
    %300 = vmatpush1.msra.mxu0 0.0
    %301 = vmatprep.subr.mxu0 0.0
    %302 = vmatpush1.msra.mxu0 0.0
    %303 = vmatprep.subr.mxu0 0.0
    %304 = vmatpush1.msra.mxu0 0.0
    %305 = vmatprep.subr.mxu0 0.0
    %306 = vmatpush1.msra.mxu0 0.0
    %307 = vmatprep.subr.mxu0 0.0
    %308 = vmatpush1.msra.mxu0 0.0
    %309 = vmatprep.subr.mxu0 0.0
    %310 = vmatpush1.msra.mxu0 0.0
    %311 = vmatprep.subr.mxu0 0.0
    %312 = vmatpush1.msra.mxu0 0.0
    %313 = vmatprep.subr.mxu0 0.0
    %314 = vmatpush1.msra.mxu0 0.0
    %315 = vmatprep.subr.mxu0 0.0
    %316 = vmatpush1.msra.mxu0 0.0
    %317 = vmatprep.subr.mxu0 0.0
    %318 = vmatpush1.msra.mxu0 0.0
    %319 = vmatprep.subr.mxu0 0.0
    %320 = vmatpush1.msra.mxu0 0.0
    %321 = vmatprep.subr.mxu0 0.0
    %322 = vmatpush1.msra.mxu0 0.0
    %323 = vmatprep.subr.mxu0 0.0
    %324 = vmatpush1.msra.mxu0 0.0
    %325 = vmatprep.subr.mxu0 0.0
    %326 = vmatpush1.msra.mxu0 0.0
    %327 = vmatprep.mubr.f32.mxu0 0.0
    %v328 = vand.u32 %v49, 4294901760
    %v329 = vsub.f32 %v49, %v328
    %330 = vmatmul.mubr.f32.gmra.mrb[0].mxu0 %v329
    %v331 = vpop.f32.mrb[0].mxu0
    %v332 = vadd.f32 %v243, %v331
    %v333 = vpop.f32.mrb[0].mxu0
    %v334 = vadd.f32 %v245, %v333
    %335 = vdwg.mxu0
    %v336 = vand.u32 %v40, 4294901760
    %337 = vmatprep.subr.mxu0 %v336
    %v338 = vand.u32 %v39, 4294901760
    %339 = vmatpush1.msra.mxu0 %v338
    %v340 = vand.u32 %v42, 4294901760
    %341 = vmatprep.subr.mxu0 %v340
    %v342 = vand.u32 %v41, 4294901760
    %343 = vmatpush1.msra.mxu0 %v342
    %v344 = vand.u32 %v44, 4294901760
    %345 = vmatprep.subr.mxu0 %v344
    %v346 = vand.u32 %v43, 4294901760
    %347 = vmatpush1.msra.mxu0 %v346
    %v348 = vand.u32 %v46, 4294901760
    %349 = vmatprep.subr.mxu0 %v348
    %v350 = vand.u32 %v45, 4294901760
    %351 = vmatpush1.msra.mxu0 %v350
    %352 = vmatprep.subr.mxu0 0.0
    %353 = vmatpush1.msra.mxu0 0.0
    %354 = vmatprep.subr.mxu0 0.0
    %355 = vmatpush1.msra.mxu0 0.0
    %356 = vmatprep.subr.mxu0 0.0
    %357 = vmatpush1.msra.mxu0 0.0
    %358 = vmatprep.subr.mxu0 0.0
    %359 = vmatpush1.msra.mxu0 0.0
    %360 = vmatprep.subr.mxu0 0.0
    %361 = vmatpush1.msra.mxu0 0.0
    %362 = vmatprep.subr.mxu0 0.0
    %363 = vmatpush1.msra.mxu0 0.0
    %364 = vmatprep.subr.mxu0 0.0
    %365 = vmatpush1.msra.mxu0 0.0
    %366 = vmatprep.subr.mxu0 0.0
    %367 = vmatpush1.msra.mxu0 0.0
    %368 = vmatprep.subr.mxu0 0.0
    %369 = vmatpush1.msra.mxu0 0.0
    %370 = vmatprep.subr.mxu0 0.0
    %371 = vmatpush1.msra.mxu0 0.0
    %372 = vmatprep.subr.mxu0 0.0
    %373 = vmatpush1.msra.mxu0 0.0
    %374 = vmatprep.subr.mxu0 0.0
    %375 = vmatpush1.msra.mxu0 0.0
    %376 = vmatprep.subr.mxu0 0.0
    %377 = vmatpush1.msra.mxu0 0.0
    %378 = vmatprep.subr.mxu0 0.0
    %379 = vmatpush1.msra.mxu0 0.0
    %380 = vmatprep.subr.mxu0 0.0
    %381 = vmatpush1.msra.mxu0 0.0
    %382 = vmatprep.subr.mxu0 0.0
    %383 = vmatpush1.msra.mxu0 0.0
    %384 = vmatprep.subr.mxu0 0.0
    %385 = vmatpush1.msra.mxu0 0.0
    %386 = vmatprep.subr.mxu0 0.0
    %387 = vmatpush1.msra.mxu0 0.0
    %388 = vmatprep.subr.mxu0 0.0
    %389 = vmatpush1.msra.mxu0 0.0
    %390 = vmatprep.subr.mxu0 0.0
    %391 = vmatpush1.msra.mxu0 0.0
    %392 = vmatprep.subr.mxu0 0.0
    %393 = vmatpush1.msra.mxu0 0.0
    %394 = vmatprep.subr.mxu0 0.0
    %395 = vmatpush1.msra.mxu0 0.0
    %396 = vmatprep.subr.mxu0 0.0
    %397 = vmatpush1.msra.mxu0 0.0
    %398 = vmatprep.subr.mxu0 0.0
    %399 = vmatpush1.msra.mxu0 0.0
    %400 = vmatprep.subr.mxu0 0.0
    %401 = vmatpush1.msra.mxu0 0.0
    %402 = vmatprep.subr.mxu0 0.0
    %403 = vmatpush1.msra.mxu0 0.0
    %404 = vmatprep.subr.mxu0 0.0
    %405 = vmatpush1.msra.mxu0 0.0
    %406 = vmatprep.subr.mxu0 0.0
    %407 = vmatpush1.msra.mxu0 0.0
    %408 = vmatprep.mubr.f32.mxu0 0.0
    %v409 = vand.u32 %v49, 4294901760
    %v410 = vsub.f32 %v49, %v409
    %v411 = vand.u32 %v410, 4294901760
    %412 = vmatmul.mubr.f32.gmra.mrb[0].mxu0 %v411
    %v413 = vpop.f32.mrb[0].mxu0
    %v414 = vadd.f32 %v332, %v413
    %v415 = vpop.f32.mrb[0].mxu0
    %v416 = vadd.f32 %v334, %v415
    %417 = vdwg.mxu0
    %v418 = vand.u32 %v40, 4294901760
    %v419 = vsub.f32 %v40, %v418
    %v420 = vand.u32 %v419, 4294901760
    %421 = vmatprep.subr.mxu0 %v420
    %v422 = vand.u32 %v39, 4294901760
    %v423 = vsub.f32 %v39, %v422
    %v424 = vand.u32 %v423, 4294901760
    %425 = vmatpush1.msra.mxu0 %v424
    %v426 = vand.u32 %v42, 4294901760
    %v427 = vsub.f32 %v42, %v426
    %v428 = vand.u32 %v427, 4294901760
    %429 = vmatprep.subr.mxu0 %v428
    %v430 = vand.u32 %v41, 4294901760
    %v431 = vsub.f32 %v41, %v430
    %v432 = vand.u32 %v431, 4294901760
    %433 = vmatpush1.msra.mxu0 %v432
    %v434 = vand.u32 %v44, 4294901760
    %v435 = vsub.f32 %v44, %v434
    %v436 = vand.u32 %v435, 4294901760
    %437 = vmatprep.subr.mxu0 %v436
    %v438 = vand.u32 %v43, 4294901760
    %v439 = vsub.f32 %v43, %v438
    %v440 = vand.u32 %v439, 4294901760
    %441 = vmatpush1.msra.mxu0 %v440
    %v442 = vand.u32 %v46, 4294901760
    %v443 = vsub.f32 %v46, %v442
    %v444 = vand.u32 %v443, 4294901760
    %445 = vmatprep.subr.mxu0 %v444
    %v446 = vand.u32 %v45, 4294901760
    %v447 = vsub.f32 %v45, %v446
    %v448 = vand.u32 %v447, 4294901760
    %449 = vmatpush1.msra.mxu0 %v448
    %450 = vmatprep.subr.mxu0 0.0
    %451 = vmatpush1.msra.mxu0 0.0
    %452 = vmatprep.subr.mxu0 0.0
    %453 = vmatpush1.msra.mxu0 0.0
    %454 = vmatprep.subr.mxu0 0.0
    %455 = vmatpush1.msra.mxu0 0.0
    %456 = vmatprep.subr.mxu0 0.0
    %457 = vmatpush1.msra.mxu0 0.0
    %458 = vmatprep.subr.mxu0 0.0
    %459 = vmatpush1.msra.mxu0 0.0
    %460 = vmatprep.subr.mxu0 0.0
    %461 = vmatpush1.msra.mxu0 0.0
    %462 = vmatprep.subr.mxu0 0.0
    %463 = vmatpush1.msra.mxu0 0.0
    %464 = vmatprep.subr.mxu0 0.0
    %465 = vmatpush1.msra.mxu0 0.0
    %466 = vmatprep.subr.mxu0 0.0
    %467 = vmatpush1.msra.mxu0 0.0
    %468 = vmatprep.subr.mxu0 0.0
    %469 = vmatpush1.msra.mxu0 0.0
    %470 = vmatprep.subr.mxu0 0.0
    %471 = vmatpush1.msra.mxu0 0.0
    %472 = vmatprep.subr.mxu0 0.0
    %473 = vmatpush1.msra.mxu0 0.0
    %474 = vmatprep.subr.mxu0 0.0
    %475 = vmatpush1.msra.mxu0 0.0
    %476 = vmatprep.subr.mxu0 0.0
    %477 = vmatpush1.msra.mxu0 0.0
    %478 = vmatprep.subr.mxu0 0.0
    %479 = vmatpush1.msra.mxu0 0.0
    %480 = vmatprep.subr.mxu0 0.0
    %481 = vmatpush1.msra.mxu0 0.0
    %482 = vmatprep.subr.mxu0 0.0
    %483 = vmatpush1.msra.mxu0 0.0
    %484 = vmatprep.subr.mxu0 0.0
    %485 = vmatpush1.msra.mxu0 0.0
    %486 = vmatprep.subr.mxu0 0.0
    %487 = vmatpush1.msra.mxu0 0.0
    %488 = vmatprep.subr.mxu0 0.0
    %489 = vmatpush1.msra.mxu0 0.0
    %490 = vmatprep.subr.mxu0 0.0
    %491 = vmatpush1.msra.mxu0 0.0
    %492 = vmatprep.subr.mxu0 0.0
    %493 = vmatpush1.msra.mxu0 0.0
    %494 = vmatprep.subr.mxu0 0.0
    %495 = vmatpush1.msra.mxu0 0.0
    %496 = vmatprep.subr.mxu0 0.0
    %497 = vmatpush1.msra.mxu0 0.0
    %498 = vmatprep.subr.mxu0 0.0
    %499 = vmatpush1.msra.mxu0 0.0
    %500 = vmatprep.subr.mxu0 0.0
    %501 = vmatpush1.msra.mxu0 0.0
    %502 = vmatprep.subr.mxu0 0.0
    %503 = vmatpush1.msra.mxu0 0.0
    %504 = vmatprep.subr.mxu0 0.0
    %505 = vmatpush1.msra.mxu0 0.0
    %506 = vmatprep.mubr.f32.mxu0 0.0
    %v507 = vand.u32 %v49, 4294901760
    %508 = vmatmul.mubr.f32.gmra.mrb[0].mxu0 %v507
    %v509 = vpop.f32.mrb[0].mxu0
    %v510 = vadd.f32 %v414, %v509
    %v511 = vpop.f32.mrb[0].mxu0
    %v512 = vadd.f32 %v416, %v511
    %513 = vdwg.mxu0
    %v514 = vand.u32 %v40, 4294901760
    %515 = vmatprep.subr.mxu0 %v514
    %v516 = vand.u32 %v39, 4294901760
    %517 = vmatpush1.msra.mxu0 %v516
    %v518 = vand.u32 %v42, 4294901760
    %519 = vmatprep.subr.mxu0 %v518
    %v520 = vand.u32 %v41, 4294901760
    %521 = vmatpush1.msra.mxu0 %v520
    %v522 = vand.u32 %v44, 4294901760
    %523 = vmatprep.subr.mxu0 %v522
    %v524 = vand.u32 %v43, 4294901760
    %525 = vmatpush1.msra.mxu0 %v524
    %v526 = vand.u32 %v46, 4294901760
    %527 = vmatprep.subr.mxu0 %v526
    %v528 = vand.u32 %v45, 4294901760
    %529 = vmatpush1.msra.mxu0 %v528
    %530 = vmatprep.subr.mxu0 0.0
    %531 = vmatpush1.msra.mxu0 0.0
    %532 = vmatprep.subr.mxu0 0.0
    %533 = vmatpush1.msra.mxu0 0.0
    %534 = vmatprep.subr.mxu0 0.0
    %535 = vmatpush1.msra.mxu0 0.0
    %536 = vmatprep.subr.mxu0 0.0
    %537 = vmatpush1.msra.mxu0 0.0
    %538 = vmatprep.subr.mxu0 0.0
    %539 = vmatpush1.msra.mxu0 0.0
    %540 = vmatprep.subr.mxu0 0.0
    %541 = vmatpush1.msra.mxu0 0.0
    %542 = vmatprep.subr.mxu0 0.0
    %543 = vmatpush1.msra.mxu0 0.0
    %544 = vmatprep.subr.mxu0 0.0
    %545 = vmatpush1.msra.mxu0 0.0
    %546 = vmatprep.subr.mxu0 0.0
    %547 = vmatpush1.msra.mxu0 0.0
    %548 = vmatprep.subr.mxu0 0.0
    %549 = vmatpush1.msra.mxu0 0.0
    %550 = vmatprep.subr.mxu0 0.0
    %551 = vmatpush1.msra.mxu0 0.0
    %552 = vmatprep.subr.mxu0 0.0
    %553 = vmatpush1.msra.mxu0 0.0
    %554 = vmatprep.subr.mxu0 0.0
    %555 = vmatpush1.msra.mxu0 0.0
    %556 = vmatprep.subr.mxu0 0.0
    %557 = vmatpush1.msra.mxu0 0.0
    %558 = vmatprep.subr.mxu0 0.0
    %559 = vmatpush1.msra.mxu0 0.0
    %560 = vmatprep.subr.mxu0 0.0
    %561 = vmatpush1.msra.mxu0 0.0
    %562 = vmatprep.subr.mxu0 0.0
    %563 = vmatpush1.msra.mxu0 0.0
    %564 = vmatprep.subr.mxu0 0.0
    %565 = vmatpush1.msra.mxu0 0.0
    %566 = vmatprep.subr.mxu0 0.0
    %567 = vmatpush1.msra.mxu0 0.0
    %568 = vmatprep.subr.mxu0 0.0
    %569 = vmatpush1.msra.mxu0 0.0
    %570 = vmatprep.subr.mxu0 0.0
    %571 = vmatpush1.msra.mxu0 0.0
    %572 = vmatprep.subr.mxu0 0.0
    %573 = vmatpush1.msra.mxu0 0.0
    %574 = vmatprep.subr.mxu0 0.0
    %575 = vmatpush1.msra.mxu0 0.0
    %576 = vmatprep.subr.mxu0 0.0
    %577 = vmatpush1.msra.mxu0 0.0
    %578 = vmatprep.subr.mxu0 0.0
    %579 = vmatpush1.msra.mxu0 0.0
    %580 = vmatprep.subr.mxu0 0.0
    %581 = vmatpush1.msra.mxu0 0.0
    %582 = vmatprep.subr.mxu0 0.0
    %583 = vmatpush1.msra.mxu0 0.0
    %584 = vmatprep.subr.mxu0 0.0
    %585 = vmatpush1.msra.mxu0 0.0
    %586 = vmatprep.mubr.f32.mxu0 0.0
    %v587 = vand.u32 %v49, 4294901760
    %588 = vmatmul.mubr.f32.gmra.mrb[0].mxu0 %v587
    %v589 = vpop.f32.mrb[0].mxu0
    %v590 = vadd.f32 %v510, %v589
    %v591 = vpop.f32.mrb[0].mxu0
    %v592 = vadd.f32 %v512, %v591
    %593 = vdwg.mxu0
    %v594 = vld [vmem:[%s3] sm:$0xff]
    %v595 = vld [vmem:[%s3 + $0x8] sm:$0xff]
    %v596 = vld [vmem:[%s3 + $0x10] sm:$0xff]
    %v597 = vld [vmem:[%s3 + $0x18] sm:$0xff]
    %v598 = vld [vmem:[%s3 + $0x20] sm:$0xff]
    %v599 = vld [vmem:[%s3 + $0x28] sm:$0xff]
    %v600 = vld [vmem:[%s3 + $0x30] sm:$0xff]
    %v601 = vld [vmem:[%s3 + $0x38] sm:$0xff]
    %v603 = vsel %vm47, %v38, 0
    %v605 = vand.u32 %v595, 4294901760
    %606 = vmatprep.subr.mxu0 %v605
    %v607 = vand.u32 %v594, 4294901760
    %608 = vmatpush1.msra.mxu0 %v607
    %v609 = vand.u32 %v597, 4294901760
    %610 = vmatprep.subr.mxu0 %v609
    %v611 = vand.u32 %v596, 4294901760
    %612 = vmatpush1.msra.mxu0 %v611
    %v613 = vand.u32 %v599, 4294901760
    %614 = vmatprep.subr.mxu0 %v613
    %v615 = vand.u32 %v598, 4294901760
    %616 = vmatpush1.msra.mxu0 %v615
    %v617 = vand.u32 %v601, 4294901760
    %618 = vmatprep.subr.mxu0 %v617
    %v619 = vand.u32 %v600, 4294901760
    %620 = vmatpush1.msra.mxu0 %v619
    %621 = vmatprep.subr.mxu0 0.0
    %622 = vmatpush1.msra.mxu0 0.0
    %623 = vmatprep.subr.mxu0 0.0
    %624 = vmatpush1.msra.mxu0 0.0
    %625 = vmatprep.subr.mxu0 0.0
    %626 = vmatpush1.msra.mxu0 0.0
    %627 = vmatprep.subr.mxu0 0.0
    %628 = vmatpush1.msra.mxu0 0.0
    %629 = vmatprep.subr.mxu0 0.0
    %630 = vmatpush1.msra.mxu0 0.0
    %631 = vmatprep.subr.mxu0 0.0
    %632 = vmatpush1.msra.mxu0 0.0
    %633 = vmatprep.subr.mxu0 0.0
    %634 = vmatpush1.msra.mxu0 0.0
    %635 = vmatprep.subr.mxu0 0.0
    %636 = vmatpush1.msra.mxu0 0.0
    %637 = vmatprep.subr.mxu0 0.0
    %638 = vmatpush1.msra.mxu0 0.0
    %639 = vmatprep.subr.mxu0 0.0
    %640 = vmatpush1.msra.mxu0 0.0
    %641 = vmatprep.subr.mxu0 0.0
    %642 = vmatpush1.msra.mxu0 0.0
    %643 = vmatprep.subr.mxu0 0.0
    %644 = vmatpush1.msra.mxu0 0.0
    %645 = vmatprep.subr.mxu0 0.0
    %646 = vmatpush1.msra.mxu0 0.0
    %647 = vmatprep.subr.mxu0 0.0
    %648 = vmatpush1.msra.mxu0 0.0
    %649 = vmatprep.subr.mxu0 0.0
    %650 = vmatpush1.msra.mxu0 0.0
    %651 = vmatprep.subr.mxu0 0.0
    %652 = vmatpush1.msra.mxu0 0.0
    %653 = vmatprep.subr.mxu0 0.0
    %654 = vmatpush1.msra.mxu0 0.0
    %655 = vmatprep.subr.mxu0 0.0
    %656 = vmatpush1.msra.mxu0 0.0
    %657 = vmatprep.subr.mxu0 0.0
    %658 = vmatpush1.msra.mxu0 0.0
    %659 = vmatprep.subr.mxu0 0.0
    %660 = vmatpush1.msra.mxu0 0.0
    %661 = vmatprep.subr.mxu0 0.0
    %662 = vmatpush1.msra.mxu0 0.0
    %663 = vmatprep.subr.mxu0 0.0
    %664 = vmatpush1.msra.mxu0 0.0
    %665 = vmatprep.subr.mxu0 0.0
    %666 = vmatpush1.msra.mxu0 0.0
    %667 = vmatprep.subr.mxu0 0.0
    %668 = vmatpush1.msra.mxu0 0.0
    %669 = vmatprep.subr.mxu0 0.0
    %670 = vmatpush1.msra.mxu0 0.0
    %671 = vmatprep.subr.mxu0 0.0
    %672 = vmatpush1.msra.mxu0 0.0
    %673 = vmatprep.subr.mxu0 0.0
    %674 = vmatpush1.msra.mxu0 0.0
    %675 = vmatprep.subr.mxu0 0.0
    %676 = vmatpush1.msra.mxu0 0.0
    %677 = vmatprep.mubr.f32.mxu0 0.0
    %v678 = vand.u32 %v603, 4294901760
    %v679 = vsub.f32 %v603, %v678
    %v680 = vand.u32 %v679, 4294901760
    %v681 = vsub.f32 %v679, %v680
    %v682 = vand.u32 %v681, 4294901760
    %683 = vmatmul.mubr.f32.gmra.mrb[0].mxu0 %v682
    %v684 = vpop.f32.mrb[0].mxu0
    %v685 = vadd.f32 0.0, %v684
    %v686 = vpop.f32.mrb[0].mxu0
    %v687 = vadd.f32 0.0, %v686
    %688 = vdwg.mxu0
    %v689 = vand.u32 %v595, 4294901760
    %v690 = vsub.f32 %v595, %v689
    %v691 = vand.u32 %v690, 4294901760
    %v692 = vsub.f32 %v690, %v691
    %v693 = vand.u32 %v692, 4294901760
    %694 = vmatprep.subr.mxu0 %v693
    %v695 = vand.u32 %v594, 4294901760
    %v696 = vsub.f32 %v594, %v695
    %v697 = vand.u32 %v696, 4294901760
    %v698 = vsub.f32 %v696, %v697
    %v699 = vand.u32 %v698, 4294901760
    %700 = vmatpush1.msra.mxu0 %v699
    %v701 = vand.u32 %v597, 4294901760
    %v702 = vsub.f32 %v597, %v701
    %v703 = vand.u32 %v702, 4294901760
    %v704 = vsub.f32 %v702, %v703
    %v705 = vand.u32 %v704, 4294901760
    %706 = vmatprep.subr.mxu0 %v705
    %v707 = vand.u32 %v596, 4294901760
    %v708 = vsub.f32 %v596, %v707
    %v709 = vand.u32 %v708, 4294901760
    %v710 = vsub.f32 %v708, %v709
    %v711 = vand.u32 %v710, 4294901760
    %712 = vmatpush1.msra.mxu0 %v711
    %v713 = vand.u32 %v599, 4294901760
    %v714 = vsub.f32 %v599, %v713
    %v715 = vand.u32 %v714, 4294901760
    %v716 = vsub.f32 %v714, %v715
    %v717 = vand.u32 %v716, 4294901760
    %718 = vmatprep.subr.mxu0 %v717
    %v719 = vand.u32 %v598, 4294901760
    %v720 = vsub.f32 %v598, %v719
    %v721 = vand.u32 %v720, 4294901760
    %v722 = vsub.f32 %v720, %v721
    %v723 = vand.u32 %v722, 4294901760
    %724 = vmatpush1.msra.mxu0 %v723
    %v725 = vand.u32 %v601, 4294901760
    %v726 = vsub.f32 %v601, %v725
    %v727 = vand.u32 %v726, 4294901760
    %v728 = vsub.f32 %v726, %v727
    %v729 = vand.u32 %v728, 4294901760
    %730 = vmatprep.subr.mxu0 %v729
    %v731 = vand.u32 %v600, 4294901760
    %v732 = vsub.f32 %v600, %v731
    %v733 = vand.u32 %v732, 4294901760
    %v734 = vsub.f32 %v732, %v733
    %v735 = vand.u32 %v734, 4294901760
    %736 = vmatpush1.msra.mxu0 %v735
    %737 = vmatprep.subr.mxu0 0.0
    %738 = vmatpush1.msra.mxu0 0.0
    %739 = vmatprep.subr.mxu0 0.0
    %740 = vmatpush1.msra.mxu0 0.0
    %741 = vmatprep.subr.mxu0 0.0
    %742 = vmatpush1.msra.mxu0 0.0
    %743 = vmatprep.subr.mxu0 0.0
    %744 = vmatpush1.msra.mxu0 0.0
    %745 = vmatprep.subr.mxu0 0.0
    %746 = vmatpush1.msra.mxu0 0.0
    %747 = vmatprep.subr.mxu0 0.0
    %748 = vmatpush1.msra.mxu0 0.0
    %749 = vmatprep.subr.mxu0 0.0
    %750 = vmatpush1.msra.mxu0 0.0
    %751 = vmatprep.subr.mxu0 0.0
    %752 = vmatpush1.msra.mxu0 0.0
    %753 = vmatprep.subr.mxu0 0.0
    %754 = vmatpush1.msra.mxu0 0.0
    %755 = vmatprep.subr.mxu0 0.0
    %756 = vmatpush1.msra.mxu0 0.0
    %757 = vmatprep.subr.mxu0 0.0
    %758 = vmatpush1.msra.mxu0 0.0
    %759 = vmatprep.subr.mxu0 0.0
    %760 = vmatpush1.msra.mxu0 0.0
    %761 = vmatprep.subr.mxu0 0.0
    %762 = vmatpush1.msra.mxu0 0.0
    %763 = vmatprep.subr.mxu0 0.0
    %764 = vmatpush1.msra.mxu0 0.0
    %765 = vmatprep.subr.mxu0 0.0
    %766 = vmatpush1.msra.mxu0 0.0
    %767 = vmatprep.subr.mxu0 0.0
    %768 = vmatpush1.msra.mxu0 0.0
    %769 = vmatprep.subr.mxu0 0.0
    %770 = vmatpush1.msra.mxu0 0.0
    %771 = vmatprep.subr.mxu0 0.0
    %772 = vmatpush1.msra.mxu0 0.0
    %773 = vmatprep.subr.mxu0 0.0
    %774 = vmatpush1.msra.mxu0 0.0
    %775 = vmatprep.subr.mxu0 0.0
    %776 = vmatpush1.msra.mxu0 0.0
    %777 = vmatprep.subr.mxu0 0.0
    %778 = vmatpush1.msra.mxu0 0.0
    %779 = vmatprep.subr.mxu0 0.0
    %780 = vmatpush1.msra.mxu0 0.0
    %781 = vmatprep.subr.mxu0 0.0
    %782 = vmatpush1.msra.mxu0 0.0
    %783 = vmatprep.subr.mxu0 0.0
    %784 = vmatpush1.msra.mxu0 0.0
    %785 = vmatprep.subr.mxu0 0.0
    %786 = vmatpush1.msra.mxu0 0.0
    %787 = vmatprep.subr.mxu0 0.0
    %788 = vmatpush1.msra.mxu0 0.0
    %789 = vmatprep.subr.mxu0 0.0
    %790 = vmatpush1.msra.mxu0 0.0
    %791 = vmatprep.subr.mxu0 0.0
    %792 = vmatpush1.msra.mxu0 0.0
    %793 = vmatprep.mubr.f32.mxu0 0.0
    %v794 = vand.u32 %v603, 4294901760
    %795 = vmatmul.mubr.f32.gmra.mrb[0].mxu0 %v794
    %v796 = vpop.f32.mrb[0].mxu0
    %v797 = vadd.f32 %v685, %v796
    %v798 = vpop.f32.mrb[0].mxu0
    %v799 = vadd.f32 %v687, %v798
    %800 = vdwg.mxu0
    %v801 = vand.u32 %v595, 4294901760
    %v802 = vsub.f32 %v595, %v801
    %803 = vmatprep.subr.mxu0 %v802
    %v804 = vand.u32 %v594, 4294901760
    %v805 = vsub.f32 %v594, %v804
    %806 = vmatpush1.msra.mxu0 %v805
    %v807 = vand.u32 %v597, 4294901760
    %v808 = vsub.f32 %v597, %v807
    %809 = vmatprep.subr.mxu0 %v808
    %v810 = vand.u32 %v596, 4294901760
    %v811 = vsub.f32 %v596, %v810
    %812 = vmatpush1.msra.mxu0 %v811
    %v813 = vand.u32 %v599, 4294901760
    %v814 = vsub.f32 %v599, %v813
    %815 = vmatprep.subr.mxu0 %v814
    %v816 = vand.u32 %v598, 4294901760
    %v817 = vsub.f32 %v598, %v816
    %818 = vmatpush1.msra.mxu0 %v817
    %v819 = vand.u32 %v601, 4294901760
    %v820 = vsub.f32 %v601, %v819
    %821 = vmatprep.subr.mxu0 %v820
    %v822 = vand.u32 %v600, 4294901760
    %v823 = vsub.f32 %v600, %v822
    %824 = vmatpush1.msra.mxu0 %v823
    %825 = vmatprep.subr.mxu0 0.0
    %826 = vmatpush1.msra.mxu0 0.0
    %827 = vmatprep.subr.mxu0 0.0
    %828 = vmatpush1.msra.mxu0 0.0
    %829 = vmatprep.subr.mxu0 0.0
    %830 = vmatpush1.msra.mxu0 0.0
    %831 = vmatprep.subr.mxu0 0.0
    %832 = vmatpush1.msra.mxu0 0.0
    %833 = vmatprep.subr.mxu0 0.0
    %834 = vmatpush1.msra.mxu0 0.0
    %835 = vmatprep.subr.mxu0 0.0
    %836 = vmatpush1.msra.mxu0 0.0
    %837 = vmatprep.subr.mxu0 0.0
    %838 = vmatpush1.msra.mxu0 0.0
    %839 = vmatprep.subr.mxu0 0.0
    %840 = vmatpush1.msra.mxu0 0.0
    %841 = vmatprep.subr.mxu0 0.0
    %842 = vmatpush1.msra.mxu0 0.0
    %843 = vmatprep.subr.mxu0 0.0
    %844 = vmatpush1.msra.mxu0 0.0
    %845 = vmatprep.subr.mxu0 0.0
    %846 = vmatpush1.msra.mxu0 0.0
    %847 = vmatprep.subr.mxu0 0.0
    %848 = vmatpush1.msra.mxu0 0.0
    %849 = vmatprep.subr.mxu0 0.0
    %850 = vmatpush1.msra.mxu0 0.0
    %851 = vmatprep.subr.mxu0 0.0
    %852 = vmatpush1.msra.mxu0 0.0
    %853 = vmatprep.subr.mxu0 0.0
    %854 = vmatpush1.msra.mxu0 0.0
    %855 = vmatprep.subr.mxu0 0.0
    %856 = vmatpush1.msra.mxu0 0.0
    %857 = vmatprep.subr.mxu0 0.0
    %858 = vmatpush1.msra.mxu0 0.0
    %859 = vmatprep.subr.mxu0 0.0
    %860 = vmatpush1.msra.mxu0 0.0
    %861 = vmatprep.subr.mxu0 0.0
    %862 = vmatpush1.msra.mxu0 0.0
    %863 = vmatprep.subr.mxu0 0.0
    %864 = vmatpush1.msra.mxu0 0.0
    %865 = vmatprep.subr.mxu0 0.0
    %866 = vmatpush1.msra.mxu0 0.0
    %867 = vmatprep.subr.mxu0 0.0
    %868 = vmatpush1.msra.mxu0 0.0
    %869 = vmatprep.subr.mxu0 0.0
    %870 = vmatpush1.msra.mxu0 0.0
    %871 = vmatprep.subr.mxu0 0.0
    %872 = vmatpush1.msra.mxu0 0.0
    %873 = vmatprep.subr.mxu0 0.0
    %874 = vmatpush1.msra.mxu0 0.0
    %875 = vmatprep.subr.mxu0 0.0
    %876 = vmatpush1.msra.mxu0 0.0
    %877 = vmatprep.subr.mxu0 0.0
    %878 = vmatpush1.msra.mxu0 0.0
    %879 = vmatprep.subr.mxu0 0.0
    %880 = vmatpush1.msra.mxu0 0.0
    %881 = vmatprep.mubr.f32.mxu0 0.0
    %v882 = vand.u32 %v603, 4294901760
    %v883 = vsub.f32 %v603, %v882
    %884 = vmatmul.mubr.f32.gmra.mrb[0].mxu0 %v883
    %v885 = vpop.f32.mrb[0].mxu0
    %v886 = vadd.f32 %v797, %v885
    %v887 = vpop.f32.mrb[0].mxu0
    %v888 = vadd.f32 %v799, %v887
    %889 = vdwg.mxu0
    %v890 = vand.u32 %v595, 4294901760
    %891 = vmatprep.subr.mxu0 %v890
    %v892 = vand.u32 %v594, 4294901760
    %893 = vmatpush1.msra.mxu0 %v892
    %v894 = vand.u32 %v597, 4294901760
    %895 = vmatprep.subr.mxu0 %v894
    %v896 = vand.u32 %v596, 4294901760
    %897 = vmatpush1.msra.mxu0 %v896
    %v898 = vand.u32 %v599, 4294901760
    %899 = vmatprep.subr.mxu0 %v898
    %v900 = vand.u32 %v598, 4294901760
    %901 = vmatpush1.msra.mxu0 %v900
    %v902 = vand.u32 %v601, 4294901760
    %903 = vmatprep.subr.mxu0 %v902
    %v904 = vand.u32 %v600, 4294901760
    %905 = vmatpush1.msra.mxu0 %v904
    %906 = vmatprep.subr.mxu0 0.0
    %907 = vmatpush1.msra.mxu0 0.0
    %908 = vmatprep.subr.mxu0 0.0
    %909 = vmatpush1.msra.mxu0 0.0
    %910 = vmatprep.subr.mxu0 0.0
    %911 = vmatpush1.msra.mxu0 0.0
    %912 = vmatprep.subr.mxu0 0.0
    %913 = vmatpush1.msra.mxu0 0.0
    %914 = vmatprep.subr.mxu0 0.0
    %915 = vmatpush1.msra.mxu0 0.0
    %916 = vmatprep.subr.mxu0 0.0
    %917 = vmatpush1.msra.mxu0 0.0
    %918 = vmatprep.subr.mxu0 0.0
    %919 = vmatpush1.msra.mxu0 0.0
    %920 = vmatprep.subr.mxu0 0.0
    %921 = vmatpush1.msra.mxu0 0.0
    %922 = vmatprep.subr.mxu0 0.0
    %923 = vmatpush1.msra.mxu0 0.0
    %924 = vmatprep.subr.mxu0 0.0
    %925 = vmatpush1.msra.mxu0 0.0
    %926 = vmatprep.subr.mxu0 0.0
    %927 = vmatpush1.msra.mxu0 0.0
    %928 = vmatprep.subr.mxu0 0.0
    %929 = vmatpush1.msra.mxu0 0.0
    %930 = vmatprep.subr.mxu0 0.0
    %931 = vmatpush1.msra.mxu0 0.0
    %932 = vmatprep.subr.mxu0 0.0
    %933 = vmatpush1.msra.mxu0 0.0
    %934 = vmatprep.subr.mxu0 0.0
    %935 = vmatpush1.msra.mxu0 0.0
    %936 = vmatprep.subr.mxu0 0.0
    %937 = vmatpush1.msra.mxu0 0.0
    %938 = vmatprep.subr.mxu0 0.0
    %939 = vmatpush1.msra.mxu0 0.0
    %940 = vmatprep.subr.mxu0 0.0
    %941 = vmatpush1.msra.mxu0 0.0
    %942 = vmatprep.subr.mxu0 0.0
    %943 = vmatpush1.msra.mxu0 0.0
    %944 = vmatprep.subr.mxu0 0.0
    %945 = vmatpush1.msra.mxu0 0.0
    %946 = vmatprep.subr.mxu0 0.0
    %947 = vmatpush1.msra.mxu0 0.0
    %948 = vmatprep.subr.mxu0 0.0
    %949 = vmatpush1.msra.mxu0 0.0
    %950 = vmatprep.subr.mxu0 0.0
    %951 = vmatpush1.msra.mxu0 0.0
    %952 = vmatprep.subr.mxu0 0.0
    %953 = vmatpush1.msra.mxu0 0.0
    %954 = vmatprep.subr.mxu0 0.0
    %955 = vmatpush1.msra.mxu0 0.0
    %956 = vmatprep.subr.mxu0 0.0
    %957 = vmatpush1.msra.mxu0 0.0
    %958 = vmatprep.subr.mxu0 0.0
    %959 = vmatpush1.msra.mxu0 0.0
    %960 = vmatprep.subr.mxu0 0.0
    %961 = vmatpush1.msra.mxu0 0.0
    %962 = vmatprep.mubr.f32.mxu0 0.0
    %v963 = vand.u32 %v603, 4294901760
    %v964 = vsub.f32 %v603, %v963
    %v965 = vand.u32 %v964, 4294901760
    %966 = vmatmul.mubr.f32.gmra.mrb[0].mxu0 %v965
    %v967 = vpop.f32.mrb[0].mxu0
    %v968 = vadd.f32 %v886, %v967
    %v969 = vpop.f32.mrb[0].mxu0
    %v970 = vadd.f32 %v888, %v969
    %971 = vdwg.mxu0
    %v972 = vand.u32 %v595, 4294901760
    %v973 = vsub.f32 %v595, %v972
    %v974 = vand.u32 %v973, 4294901760
    %975 = vmatprep.subr.mxu0 %v974
    %v976 = vand.u32 %v594, 4294901760
    %v977 = vsub.f32 %v594, %v976
    %v978 = vand.u32 %v977, 4294901760
    %979 = vmatpush1.msra.mxu0 %v978
    %v980 = vand.u32 %v597, 4294901760
    %v981 = vsub.f32 %v597, %v980
    %v982 = vand.u32 %v981, 4294901760
    %983 = vmatprep.subr.mxu0 %v982
    %v984 = vand.u32 %v596, 4294901760
    %v985 = vsub.f32 %v596, %v984
    %v986 = vand.u32 %v985, 4294901760
    %987 = vmatpush1.msra.mxu0 %v986
    %v988 = vand.u32 %v599, 4294901760
    %v989 = vsub.f32 %v599, %v988
    %v990 = vand.u32 %v989, 4294901760
    %991 = vmatprep.subr.mxu0 %v990
    %v992 = vand.u32 %v598, 4294901760
    %v993 = vsub.f32 %v598, %v992
    %v994 = vand.u32 %v993, 4294901760
    %995 = vmatpush1.msra.mxu0 %v994
    %v996 = vand.u32 %v601, 4294901760
    %v997 = vsub.f32 %v601, %v996
    %v998 = vand.u32 %v997, 4294901760
    %999 = vmatprep.subr.mxu0 %v998
    %v1000 = vand.u32 %v600, 4294901760
    %v1001 = vsub.f32 %v600, %v1000
    %v1002 = vand.u32 %v1001, 4294901760
    %1003 = vmatpush1.msra.mxu0 %v1002
    %1004 = vmatprep.subr.mxu0 0.0
    %1005 = vmatpush1.msra.mxu0 0.0
    %1006 = vmatprep.subr.mxu0 0.0
    %1007 = vmatpush1.msra.mxu0 0.0
    %1008 = vmatprep.subr.mxu0 0.0
    %1009 = vmatpush1.msra.mxu0 0.0
    %1010 = vmatprep.subr.mxu0 0.0
    %1011 = vmatpush1.msra.mxu0 0.0
    %1012 = vmatprep.subr.mxu0 0.0
    %1013 = vmatpush1.msra.mxu0 0.0
    %1014 = vmatprep.subr.mxu0 0.0
    %1015 = vmatpush1.msra.mxu0 0.0
    %1016 = vmatprep.subr.mxu0 0.0
    %1017 = vmatpush1.msra.mxu0 0.0
    %1018 = vmatprep.subr.mxu0 0.0
    %1019 = vmatpush1.msra.mxu0 0.0
    %1020 = vmatprep.subr.mxu0 0.0
    %1021 = vmatpush1.msra.mxu0 0.0
    %1022 = vmatprep.subr.mxu0 0.0
    %1023 = vmatpush1.msra.mxu0 0.0
    %1024 = vmatprep.subr.mxu0 0.0
    %1025 = vmatpush1.msra.mxu0 0.0
    %1026 = vmatprep.subr.mxu0 0.0
    %1027 = vmatpush1.msra.mxu0 0.0
    %1028 = vmatprep.subr.mxu0 0.0
    %1029 = vmatpush1.msra.mxu0 0.0
    %1030 = vmatprep.subr.mxu0 0.0
    %1031 = vmatpush1.msra.mxu0 0.0
    %1032 = vmatprep.subr.mxu0 0.0
    %1033 = vmatpush1.msra.mxu0 0.0
    %1034 = vmatprep.subr.mxu0 0.0
    %1035 = vmatpush1.msra.mxu0 0.0
    %1036 = vmatprep.subr.mxu0 0.0
    %1037 = vmatpush1.msra.mxu0 0.0
    %1038 = vmatprep.subr.mxu0 0.0
    %1039 = vmatpush1.msra.mxu0 0.0
    %1040 = vmatprep.subr.mxu0 0.0
    %1041 = vmatpush1.msra.mxu0 0.0
    %1042 = vmatprep.subr.mxu0 0.0
    %1043 = vmatpush1.msra.mxu0 0.0
    %1044 = vmatprep.subr.mxu0 0.0
    %1045 = vmatpush1.msra.mxu0 0.0
    %1046 = vmatprep.subr.mxu0 0.0
    %1047 = vmatpush1.msra.mxu0 0.0
    %1048 = vmatprep.subr.mxu0 0.0
    %1049 = vmatpush1.msra.mxu0 0.0
    %1050 = vmatprep.subr.mxu0 0.0
    %1051 = vmatpush1.msra.mxu0 0.0
    %1052 = vmatprep.subr.mxu0 0.0
    %1053 = vmatpush1.msra.mxu0 0.0
    %1054 = vmatprep.subr.mxu0 0.0
    %1055 = vmatpush1.msra.mxu0 0.0
    %1056 = vmatprep.subr.mxu0 0.0
    %1057 = vmatpush1.msra.mxu0 0.0
    %1058 = vmatprep.subr.mxu0 0.0
    %1059 = vmatpush1.msra.mxu0 0.0
    %1060 = vmatprep.mubr.f32.mxu0 0.0
    %v1061 = vand.u32 %v603, 4294901760
    %1062 = vmatmul.mubr.f32.gmra.mrb[0].mxu0 %v1061
    %v1063 = vpop.f32.mrb[0].mxu0
    %v1064 = vadd.f32 %v968, %v1063
    %v1065 = vpop.f32.mrb[0].mxu0
    %v1066 = vadd.f32 %v970, %v1065
    %1067 = vdwg.mxu0
    %v1068 = vand.u32 %v595, 4294901760
    %1069 = vmatprep.subr.mxu0 %v1068
    %v1070 = vand.u32 %v594, 4294901760
    %1071 = vmatpush1.msra.mxu0 %v1070
    %v1072 = vand.u32 %v597, 4294901760
    %1073 = vmatprep.subr.mxu0 %v1072
    %v1074 = vand.u32 %v596, 4294901760
    %1075 = vmatpush1.msra.mxu0 %v1074
    %v1076 = vand.u32 %v599, 4294901760
    %1077 = vmatprep.subr.mxu0 %v1076
    %v1078 = vand.u32 %v598, 4294901760
    %1079 = vmatpush1.msra.mxu0 %v1078
    %v1080 = vand.u32 %v601, 4294901760
    %1081 = vmatprep.subr.mxu0 %v1080
    %v1082 = vand.u32 %v600, 4294901760
    %1083 = vmatpush1.msra.mxu0 %v1082
    %1084 = vmatprep.subr.mxu0 0.0
    %1085 = vmatpush1.msra.mxu0 0.0
    %1086 = vmatprep.subr.mxu0 0.0
    %1087 = vmatpush1.msra.mxu0 0.0
    %1088 = vmatprep.subr.mxu0 0.0
    %1089 = vmatpush1.msra.mxu0 0.0
    %1090 = vmatprep.subr.mxu0 0.0
    %1091 = vmatpush1.msra.mxu0 0.0
    %1092 = vmatprep.subr.mxu0 0.0
    %1093 = vmatpush1.msra.mxu0 0.0
    %1094 = vmatprep.subr.mxu0 0.0
    %1095 = vmatpush1.msra.mxu0 0.0
    %1096 = vmatprep.subr.mxu0 0.0
    %1097 = vmatpush1.msra.mxu0 0.0
    %1098 = vmatprep.subr.mxu0 0.0
    %1099 = vmatpush1.msra.mxu0 0.0
    %1100 = vmatprep.subr.mxu0 0.0
    %1101 = vmatpush1.msra.mxu0 0.0
    %1102 = vmatprep.subr.mxu0 0.0
    %1103 = vmatpush1.msra.mxu0 0.0
    %1104 = vmatprep.subr.mxu0 0.0
    %1105 = vmatpush1.msra.mxu0 0.0
    %1106 = vmatprep.subr.mxu0 0.0
    %1107 = vmatpush1.msra.mxu0 0.0
    %1108 = vmatprep.subr.mxu0 0.0
    %1109 = vmatpush1.msra.mxu0 0.0
    %1110 = vmatprep.subr.mxu0 0.0
    %1111 = vmatpush1.msra.mxu0 0.0
    %1112 = vmatprep.subr.mxu0 0.0
    %1113 = vmatpush1.msra.mxu0 0.0
    %1114 = vmatprep.subr.mxu0 0.0
    %1115 = vmatpush1.msra.mxu0 0.0
    %1116 = vmatprep.subr.mxu0 0.0
    %1117 = vmatpush1.msra.mxu0 0.0
    %1118 = vmatprep.subr.mxu0 0.0
    %1119 = vmatpush1.msra.mxu0 0.0
    %1120 = vmatprep.subr.mxu0 0.0
    %1121 = vmatpush1.msra.mxu0 0.0
    %1122 = vmatprep.subr.mxu0 0.0
    %1123 = vmatpush1.msra.mxu0 0.0
    %1124 = vmatprep.subr.mxu0 0.0
    %1125 = vmatpush1.msra.mxu0 0.0
    %1126 = vmatprep.subr.mxu0 0.0
    %1127 = vmatpush1.msra.mxu0 0.0
    %1128 = vmatprep.subr.mxu0 0.0
    %1129 = vmatpush1.msra.mxu0 0.0
    %1130 = vmatprep.subr.mxu0 0.0
    %1131 = vmatpush1.msra.mxu0 0.0
    %1132 = vmatprep.subr.mxu0 0.0
    %1133 = vmatpush1.msra.mxu0 0.0
    %1134 = vmatprep.subr.mxu0 0.0
    %1135 = vmatpush1.msra.mxu0 0.0
    %1136 = vmatprep.subr.mxu0 0.0
    %1137 = vmatpush1.msra.mxu0 0.0
    %1138 = vmatprep.subr.mxu0 0.0
    %1139 = vmatpush1.msra.mxu0 0.0
    %1140 = vmatprep.mubr.f32.mxu0 0.0
    %v1141 = vand.u32 %v603, 4294901760
    %1142 = vmatmul.mubr.f32.gmra.mrb[0].mxu0 %v1141
    %v1143 = vpop.f32.mrb[0].mxu0
    %v1144 = vadd.f32 %v1064, %v1143
    %v1145 = vpop.f32.mrb[0].mxu0
    %v1146 = vadd.f32 %v1066, %v1145
    %1147 = vdwg.mxu0
    %v1148 = vmul.f32 %v590, %v1144
    %v1149 = vadd.f32 %v592, %v1146
    %v1150 = vld [vmem:[#allocation2] sm:$0x1]
    %v1152 = vlaneseq
    %v1153 = vshrl.u32 %v1152, 7
    %v1154 = vsub.s32 0, %v1153
    %v1155 = vrot.slane %v1150, %v1154
    %v1157 = vadd.f32 %v1149, %v1155
    %1158 = vadd.xlane.f32.xlu0 %v1148
    %v1159 = vpop.xlane.xlu0 %1158
    %v1160 = vadd.f32 %v1157, %v1159
    %vm1161 = vcmask 7168
    %1162 = vst.msk [vmem:[%s6] sm:$0xff] %vm1161, %v1160
    // Predicated region
    $region30: #{tpu_custom_call.1} parent=1 // pred_check
      _
    $region31: #{tpu_custom_call.1} parent=1 // pred_check_branch
      %1164 = sbr.rel (0) target = $region33
    $region32: #{tpu_custom_call.1} parent=1 // pred_region
      _
    $region33: #{tpu_custom_call.1} parent=1 // pred_fallthru
      _
    // Predicated region
    $region34: #{tpu_custom_call.1} parent=1 // pred_check
      _
    $region35: #{tpu_custom_call.1} parent=1 // pred_check_branch
      %1166 = sbr.rel (0) target = $region37
    $region36: #{tpu_custom_call.1} parent=1 // pred_region
      _
    $region37: #{tpu_custom_call.1} parent=1 // pred_fallthru
      _
    %1167 = vsyncpa [#allocation4], 1

// kernel: tpu_custom_call.1
$region0: #{tpu_custom_call.1}
  #allocation0 [shape = 'u32[]', space=smem, size = 0x4, offset = 0x4, fixed_abs, tag = 'smem constant byte address 0x4 - core index']
  #allocation1 [shape = 'u32[144,128]{1,0:T(1,128)}', space=vmem, size = 0x12000, scoped, tag = 'internal scratch']
  #allocation2 [shape = 'f32[1,1]{1,0:T(1,128)S(1)}', space=vmem, size = 0x200, scoped, tag = 'scoped memory for tpu_custom_call.1']
  %s0 = inlined_call_operand.hbm [shape: f32[8,32], index: 0, kind: input, shape index: {}]
  %s1 = inlined_call_operand.vmem [shape: f32[8,32], index: 1, kind: input, shape index: {}]
  %s2 = inlined_call_operand.vmem [shape: f32[32,129], index: 2, kind: input, shape index: {}]
  %s3 = inlined_call_operand.vmem [shape: f32[32,129], index: 3, kind: input, shape index: {}]
  %s4 = inlined_call_operand.vmem [shape: f32[128,1], index: 4, kind: input, shape index: {}]
  %s5 = inlined_call_operand.<no memory space> [shape: f32[1,1], index: 5, kind: input, shape index: {}]
  %s6 = inlined_call_operand.vmem [shape: f32[8,1], index: 6, kind: output, shape index: {}]
  %s7 = sld [smem:[#allocation0]]
  $region38: #{tpu_custom_call.1} parent=0
    _
  %s9 = ssub.s32 1, %s7
  %s10 = scalar_select 0, %s9, %s7
  %v11 = vstv %s5
  %12 = vst [vmem:[#allocation2] sm:$0x1] %v11
  $region1: #{tpu_custom_call.1} parent=0
    #allocation3 [shape = 'u8[4096]{0}', space=vmem, size = 0x1000, scoped, tag = 'input window, operand 0, single buffered']
    #allocation4 [shape = 's32[1]{0}', space=sflag, size = 0x4, scoped, tag = 'scoped memory for tpu_custom_call.1']
    %13 = vsyncpa [#allocation4], 0
    // Predicated region
    $region2: #{tpu_custom_call.1} parent=1 // pred_check
      _
    $region3: #{tpu_custom_call.1} parent=1 // pred_check_branch
      %15 = sbr.rel (0) target = $region5
    $region4: #{tpu_custom_call.1} parent=1 // pred_region
      %s17 = ssub.s32 128, 128
      %18 = vsyncadd [#allocation4], %s17
      %s20 = sshll.u32 [#allocation3], 4
      %s21 = int_to_ptr.vmem [resolvable:$true] %s20
      %23 = dma.hbm_to_vmem [thread:$0]  %s0, 128, %s21, [#allocation4]
    $region5: #{tpu_custom_call.1} parent=1 // pred_fallthru
      _
    // Predicated region
    $region6: #{tpu_custom_call.1} parent=1 // pred_check
      _
    $region7: #{tpu_custom_call.1} parent=1 // pred_check_branch
      %25 = sbr.rel (0) target = $region9
    $region8: #{tpu_custom_call.1} parent=1 // pred_region
      _
    $region9: #{tpu_custom_call.1} parent=1 // pred_fallthru
      _
    // Predicated region
    $region10: #{tpu_custom_call.1} parent=1 // pred_check
      _
    $region11: #{tpu_custom_call.1} parent=1 // pred_check_branch
      %27 = sbr.rel (0) target = $region13
    $region12: #{tpu_custom_call.1} parent=1 // pred_region
      _
    $region13: #{tpu_custom_call.1} parent=1 // pred_fallthru
      _
    // Predicated region
    $region14: #{tpu_custom_call.1} parent=1 // pred_check
      _
    $region15: #{tpu_custom_call.1} parent=1 // pred_check_branch
      %29 = sbr.rel (0) target = $region17
    $region16: #{tpu_custom_call.1} parent=1 // pred_region
      _
    $region17: #{tpu_custom_call.1} parent=1 // pred_fallthru
      _
    // Predicated region
    $region18: #{tpu_custom_call.1} parent=1 // pred_check
      _
    $region19: #{tpu_custom_call.1} parent=1 // pred_check_branch
      %31 = sbr.rel (0) target = $region21
    $region20: #{tpu_custom_call.1} parent=1 // pred_region
      _
    $region21: #{tpu_custom_call.1} parent=1 // pred_fallthru
      _
    // Predicated region
    $region22: #{tpu_custom_call.1} parent=1 // pred_check
      _
    $region23: #{tpu_custom_call.1} parent=1 // pred_check_branch
      %33 = sbr.rel (0) target = $region25
    $region24: #{tpu_custom_call.1} parent=1 // pred_region
      _
    $region25: #{tpu_custom_call.1} parent=1 // pred_fallthru
      _
    // Predicated region
    $region26: #{tpu_custom_call.1} parent=1 // pred_check
      _
    $region27: #{tpu_custom_call.1} parent=1 // pred_check_branch
      %35 = sbr.rel (0) target = $region29
    $region28: #{tpu_custom_call.1} parent=1 // pred_region
      %36 = dma.done [#allocation4], 128
    $region29: #{tpu_custom_call.1} parent=1 // pred_fallthru
      _
    %v37 = vld [vmem:[#allocation3] sm:$0xff]
    %v38 = vld [vmem:[%s1] sm:$0xff]
    %v39 = vld [vmem:[%s2] sm:$0xff]
    %v40 = vld [vmem:[%s2 + $0x8] sm:$0xff]
    %v41 = vld [vmem:[%s2 + $0x10] sm:$0xff]
    %v42 = vld [vmem:[%s2 + $0x18] sm:$0xff]
    %v43 = vld [vmem:[%s2 + $0x20] sm:$0xff]
    %v44 = vld [vmem:[%s2 + $0x28] sm:$0xff]
    %v45 = vld [vmem:[%s2 + $0x30] sm:$0xff]
    %v46 = vld [vmem:[%s2 + $0x38] sm:$0xff]
    %vm47 = vcmask 261120
    %v49 = vsel %vm47, %v37, 0
    %v51 = vand.u32 %v40, 4294901760
    %52 = vmatprep.subr.mxu0 %v51
    %v53 = vand.u32 %v39, 4294901760
    %54 = vmatpush1.msra.mxu0 %v53
    %v55 = vand.u32 %v42, 4294901760
    %56 = vmatprep.subr.mxu0 %v55
    %v57 = vand.u32 %v41, 4294901760
    %58 = vmatpush1.msra.mxu0 %v57
    %v59 = vand.u32 %v44, 4294901760
    %60 = vmatprep.subr.mxu0 %v59
    %v61 = vand.u32 %v43, 4294901760
    %62 = vmatpush1.msra.mxu0 %v61
    %v63 = vand.u32 %v46, 4294901760
    %64 = vmatprep.subr.mxu0 %v63
    %v65 = vand.u32 %v45, 4294901760
    %66 = vmatpush1.msra.mxu0 %v65
    %67 = vmatprep.subr.mxu0 0.0
    %68 = vmatpush1.msra.mxu0 0.0
    %69 = vmatprep.subr.mxu0 0.0
    %70 = vmatpush1.msra.mxu0 0.0
    %71 = vmatprep.subr.mxu0 0.0
    %72 = vmatpush1.msra.mxu0 0.0
    %73 = vmatprep.subr.mxu0 0.0
    %74 = vmatpush1.msra.mxu0 0.0
    %75 = vmatprep.subr.mxu0 0.0
    %76 = vmatpush1.msra.mxu0 0.0
    %77 = vmatprep.subr.mxu0 0.0
    %78 = vmatpush1.msra.mxu0 0.0
    %79 = vmatprep.subr.mxu0 0.0
    %80 = vmatpush1.msra.mxu0 0.0
    %81 = vmatprep.subr.mxu0 0.0
    %82 = vmatpush1.msra.mxu0 0.0
    %83 = vmatprep.subr.mxu0 0.0
    %84 = vmatpush1.msra.mxu0 0.0
    %85 = vmatprep.subr.mxu0 0.0
    %86 = vmatpush1.msra.mxu0 0.0
    %87 = vmatprep.subr.mxu0 0.0
    %88 = vmatpush1.msra.mxu0 0.0
    %89 = vmatprep.subr.mxu0 0.0
    %90 = vmatpush1.msra.mxu0 0.0
    %91 = vmatprep.subr.mxu0 0.0
    %92 = vmatpush1.msra.mxu0 0.0
    %93 = vmatprep.subr.mxu0 0.0
    %94 = vmatpush1.msra.mxu0 0.0
    %95 = vmatprep.subr.mxu0 0.0
    %96 = vmatpush1.msra.mxu0 0.0
    %97 = vmatprep.subr.mxu0 0.0
    %98 = vmatpush1.msra.mxu0 0.0
    %99 = vmatprep.subr.mxu0 0.0
    %100 = vmatpush1.msra.mxu0 0.0
    %101 = vmatprep.subr.mxu0 0.0
    %102 = vmatpush1.msra.mxu0 0.0
    %103 = vmatprep.subr.mxu0 0.0
    %104 = vmatpush1.msra.mxu0 0.0
    %105 = vmatprep.subr.mxu0 0.0
    %106 = vmatpush1.msra.mxu0 0.0
    %107 = vmatprep.subr.mxu0 0.0
    %108 = vmatpush1.msra.mxu0 0.0
    %109 = vmatprep.subr.mxu0 0.0
    %110 = vmatpush1.msra.mxu0 0.0
    %111 = vmatprep.subr.mxu0 0.0
    %112 = vmatpush1.msra.mxu0 0.0
    %113 = vmatprep.subr.mxu0 0.0
    %114 = vmatpush1.msra.mxu0 0.0
    %115 = vmatprep.subr.mxu0 0.0
    %116 = vmatpush1.msra.mxu0 0.0
    %117 = vmatprep.subr.mxu0 0.0
    %118 = vmatpush1.msra.mxu0 0.0
    %119 = vmatprep.subr.mxu0 0.0
    %120 = vmatpush1.msra.mxu0 0.0
    %121 = vmatprep.subr.mxu0 0.0
    %122 = vmatpush1.msra.mxu0 0.0
    %123 = vmatprep.mubr.f32.mxu0 0.0
    %v124 = vand.u32 %v49, 4294901760
    %v125 = vsub.f32 %v49, %v124
    %v126 = vand.u32 %v125, 4294901760
    %v127 = vsub.f32 %v125, %v126
    %v128 = vand.u32 %v127, 4294901760
    %129 = vmatmul.mubr.f32.gmra.mrb[0].mxu0 %v128
    %v130 = vpop.f32.mrb[0].mxu0
    %v131 = vadd.f32 0.0, %v130
    %v132 = vpop.f32.mrb[0].mxu0
    %v133 = vadd.f32 0.0, %v132
    %134 = vdwg.mxu0
    %v135 = vand.u32 %v40, 4294901760
    %v136 = vsub.f32 %v40, %v135
    %v137 = vand.u32 %v136, 4294901760
    %v138 = vsub.f32 %v136, %v137
    %v139 = vand.u32 %v138, 4294901760
    %140 = vmatprep.subr.mxu0 %v139
    %v141 = vand.u32 %v39, 4294901760
    %v142 = vsub.f32 %v39, %v141
    %v143 = vand.u32 %v142, 4294901760
    %v144 = vsub.f32 %v142, %v143
    %v145 = vand.u32 %v144, 4294901760
    %146 = vmatpush1.msra.mxu0 %v145
    %v147 = vand.u32 %v42, 4294901760
    %v148 = vsub.f32 %v42, %v147
    %v149 = vand.u32 %v148, 4294901760
    %v150 = vsub.f32 %v148, %v149
    %v151 = vand.u32 %v150, 4294901760
    %152 = vmatprep.subr.mxu0 %v151
    %v153 = vand.u32 %v41, 4294901760
    %v154 = vsub.f32 %v41, %v153
    %v155 = vand.u32 %v154, 4294901760
    %v156 = vsub.f32 %v154, %v155
    %v157 = vand.u32 %v156, 4294901760
    %158 = vmatpush1.msra.mxu0 %v157
    %v159 = vand.u32 %v44, 4294901760
    %v160 = vsub.f32 %v44, %v159
    %v161 = vand.u32 %v160, 4294901760
    %v162 = vsub.f32 %v160, %v161
    %v163 = vand.u32 %v162, 4294901760
    %164 = vmatprep.subr.mxu0 %v163
    %v165 = vand.u32 %v43, 4294901760
    %v166 = vsub.f32 %v43, %v165
    %v167 = vand.u32 %v166, 4294901760
    %v168 = vsub.f32 %v166, %v167
    %v169 = vand.u32 %v168, 4294901760
    %170 = vmatpush1.msra.mxu0 %v169
    %v171 = vand.u32 %v46, 4294901760
    %v172 = vsub.f32 %v46, %v171
    %v173 = vand.u32 %v172, 4294901760
    %v174 = vsub.f32 %v172, %v173
    %v175 = vand.u32 %v174, 4294901760
    %176 = vmatprep.subr.mxu0 %v175
    %v177 = vand.u32 %v45, 4294901760
    %v178 = vsub.f32 %v45, %v177
    %v179 = vand.u32 %v178, 4294901760
    %v180 = vsub.f32 %v178, %v179
    %v181 = vand.u32 %v180, 4294901760
    %182 = vmatpush1.msra.mxu0 %v181
    %183 = vmatprep.subr.mxu0 0.0
    %184 = vmatpush1.msra.mxu0 0.0
    %185 = vmatprep.subr.mxu0 0.0
    %186 = vmatpush1.msra.mxu0 0.0
    %187 = vmatprep.subr.mxu0 0.0
    %188 = vmatpush1.msra.mxu0 0.0
    %189 = vmatprep.subr.mxu0 0.0
    %190 = vmatpush1.msra.mxu0 0.0
    %191 = vmatprep.subr.mxu0 0.0
    %192 = vmatpush1.msra.mxu0 0.0
    %193 = vmatprep.subr.mxu0 0.0
    %194 = vmatpush1.msra.mxu0 0.0
    %195 = vmatprep.subr.mxu0 0.0
    %196 = vmatpush1.msra.mxu0 0.0
    %197 = vmatprep.subr.mxu0 0.0
    %198 = vmatpush1.msra.mxu0 0.0
    %199 = vmatprep.subr.mxu0 0.0
    %200 = vmatpush1.msra.mxu0 0.0
    %201 = vmatprep.subr.mxu0 0.0
    %202 = vmatpush1.msra.mxu0 0.0
    %203 = vmatprep.subr.mxu0 0.0
    %204 = vmatpush1.msra.mxu0 0.0
    %205 = vmatprep.subr.mxu0 0.0
    %206 = vmatpush1.msra.mxu0 0.0
    %207 = vmatprep.subr.mxu0 0.0
    %208 = vmatpush1.msra.mxu0 0.0
    %209 = vmatprep.subr.mxu0 0.0
    %210 = vmatpush1.msra.mxu0 0.0
    %211 = vmatprep.subr.mxu0 0.0
    %212 = vmatpush1.msra.mxu0 0.0
    %213 = vmatprep.subr.mxu0 0.0
    %214 = vmatpush1.msra.mxu0 0.0
    %215 = vmatprep.subr.mxu0 0.0
    %216 = vmatpush1.msra.mxu0 0.0
    %217 = vmatprep.subr.mxu0 0.0
    %218 = vmatpush1.msra.mxu0 0.0
    %219 = vmatprep.subr.mxu0 0.0
    %220 = vmatpush1.msra.mxu0 0.0
    %221 = vmatprep.subr.mxu0 0.0
    %222 = vmatpush1.msra.mxu0 0.0
    %223 = vmatprep.subr.mxu0 0.0
    %224 = vmatpush1.msra.mxu0 0.0
    %225 = vmatprep.subr.mxu0 0.0
    %226 = vmatpush1.msra.mxu0 0.0
    %227 = vmatprep.subr.mxu0 0.0
    %228 = vmatpush1.msra.mxu0 0.0
    %229 = vmatprep.subr.mxu0 0.0
    %230 = vmatpush1.msra.mxu0 0.0
    %231 = vmatprep.subr.mxu0 0.0
    %232 = vmatpush1.msra.mxu0 0.0
    %233 = vmatprep.subr.mxu0 0.0
    %234 = vmatpush1.msra.mxu0 0.0
    %235 = vmatprep.subr.mxu0 0.0
    %236 = vmatpush1.msra.mxu0 0.0
    %237 = vmatprep.subr.mxu0 0.0
    %238 = vmatpush1.msra.mxu0 0.0
    %239 = vmatprep.mubr.f32.mxu0 0.0
    %v240 = vand.u32 %v49, 4294901760
    %241 = vmatmul.mubr.f32.gmra.mrb[0].mxu0 %v240
    %v242 = vpop.f32.mrb[0].mxu0
    %v243 = vadd.f32 %v131, %v242
    %v244 = vpop.f32.mrb[0].mxu0
    %v245 = vadd.f32 %v133, %v244
    %246 = vdwg.mxu0
    %v247 = vand.u32 %v40, 4294901760
    %v248 = vsub.f32 %v40, %v247
    %249 = vmatprep.subr.mxu0 %v248
    %v250 = vand.u32 %v39, 4294901760
    %v251 = vsub.f32 %v39, %v250
    %252 = vmatpush1.msra.mxu0 %v251
    %v253 = vand.u32 %v42, 4294901760
    %v254 = vsub.f32 %v42, %v253
    %255 = vmatprep.subr.mxu0 %v254
    %v256 = vand.u32 %v41, 4294901760
    %v257 = vsub.f32 %v41, %v256
    %258 = vmatpush1.msra.mxu0 %v257
    %v259 = vand.u32 %v44, 4294901760
    %v260 = vsub.f32 %v44, %v259
    %261 = vmatprep.subr.mxu0 %v260
    %v262 = vand.u32 %v43, 4294901760
    %v263 = vsub.f32 %v43, %v262
    %264 = vmatpush1.msra.mxu0 %v263
    %v265 = vand.u32 %v46, 4294901760
    %v266 = vsub.f32 %v46, %v265
    %267 = vmatprep.subr.mxu0 %v266
    %v268 = vand.u32 %v45, 4294901760
    %v269 = vsub.f32 %v45, %v268
    %270 = vmatpush1.msra.mxu0 %v269
    %271 = vmatprep.subr.mxu0 0.0
    %272 = vmatpush1.msra.mxu0 0.0
    %273 = vmatprep.subr.mxu0 0.0
    %274 = vmatpush1.msra.mxu0 0.0
    %275 = vmatprep.subr.mxu0 0.0
    %276 = vmatpush1.msra.mxu0 0.0
    %277 = vmatprep.subr.mxu0 0.0
    %278 = vmatpush1.msra.mxu0 0.0
    %279 = vmatprep.subr.mxu0 0.0
    %280 = vmatpush1.msra.mxu0 0.0
    %281 = vmatprep.subr.mxu0 0.0
    %282 = vmatpush1.msra.mxu0 0.0
    %283 = vmatprep.subr.mxu0 0.0
    %284 = vmatpush1.msra.mxu0 0.0
    %285 = vmatprep.subr.mxu0 0.0
    %286 = vmatpush1.msra.mxu0 0.0
    %287 = vmatprep.subr.mxu0 0.0
    %288 = vmatpush1.msra.mxu0 0.0
    %289 = vmatprep.subr.mxu0 0.0
    %290 = vmatpush1.msra.mxu0 0.0
    %291 = vmatprep.subr.mxu0 0.0
    %292 = vmatpush1.msra.mxu0 0.0
    %293 = vmatprep.subr.mxu0 0.0
    %294 = vmatpush1.msra.mxu0 0.0
    %295 = vmatprep.subr.mxu0 0.0
    %296 = vmatpush1.msra.mxu0 0.0
    %297 = vmatprep.subr.mxu0 0.0
    %298 = vmatpush1.msra.mxu0 0.0
    %299 = vmatprep.subr.mxu0 0.0
    %300 = vmatpush1.msra.mxu0 0.0
    %301 = vmatprep.subr.mxu0 0.0
    %302 = vmatpush1.msra.mxu0 0.0
    %303 = vmatprep.subr.mxu0 0.0
    %304 = vmatpush1.msra.mxu0 0.0
    %305 = vmatprep.subr.mxu0 0.0
    %306 = vmatpush1.msra.mxu0 0.0
    %307 = vmatprep.subr.mxu0 0.0
    %308 = vmatpush1.msra.mxu0 0.0
    %309 = vmatprep.subr.mxu0 0.0
    %310 = vmatpush1.msra.mxu0 0.0
    %311 = vmatprep.subr.mxu0 0.0
    %312 = vmatpush1.msra.mxu0 0.0
    %313 = vmatprep.subr.mxu0 0.0
    %314 = vmatpush1.msra.mxu0 0.0
    %315 = vmatprep.subr.mxu0 0.0
    %316 = vmatpush1.msra.mxu0 0.0
    %317 = vmatprep.subr.mxu0 0.0
    %318 = vmatpush1.msra.mxu0 0.0
    %319 = vmatprep.subr.mxu0 0.0
    %320 = vmatpush1.msra.mxu0 0.0
    %321 = vmatprep.subr.mxu0 0.0
    %322 = vmatpush1.msra.mxu0 0.0
    %323 = vmatprep.subr.mxu0 0.0
    %324 = vmatpush1.msra.mxu0 0.0
    %325 = vmatprep.subr.mxu0 0.0
    %326 = vmatpush1.msra.mxu0 0.0
    %327 = vmatprep.mubr.f32.mxu0 0.0
    %v328 = vand.u32 %v49, 4294901760
    %v329 = vsub.f32 %v49, %v328
    %330 = vmatmul.mubr.f32.gmra.mrb[0].mxu0 %v329
    %v331 = vpop.f32.mrb[0].mxu0
    %v332 = vadd.f32 %v243, %v331
    %v333 = vpop.f32.mrb[0].mxu0
    %v334 = vadd.f32 %v245, %v333
    %335 = vdwg.mxu0
    %v336 = vand.u32 %v40, 4294901760
    %337 = vmatprep.subr.mxu0 %v336
    %v338 = vand.u32 %v39, 4294901760
    %339 = vmatpush1.msra.mxu0 %v338
    %v340 = vand.u32 %v42, 4294901760
    %341 = vmatprep.subr.mxu0 %v340
    %v342 = vand.u32 %v41, 4294901760
    %343 = vmatpush1.msra.mxu0 %v342
    %v344 = vand.u32 %v44, 4294901760
    %345 = vmatprep.subr.mxu0 %v344
    %v346 = vand.u32 %v43, 4294901760
    %347 = vmatpush1.msra.mxu0 %v346
    %v348 = vand.u32 %v46, 4294901760
    %349 = vmatprep.subr.mxu0 %v348
    %v350 = vand.u32 %v45, 4294901760
    %351 = vmatpush1.msra.mxu0 %v350
    %352 = vmatprep.subr.mxu0 0.0
    %353 = vmatpush1.msra.mxu0 0.0
    %354 = vmatprep.subr.mxu0 0.0
    %355 = vmatpush1.msra.mxu0 0.0
    %356 = vmatprep.subr.mxu0 0.0
    %357 = vmatpush1.msra.mxu0 0.0
    %358 = vmatprep.subr.mxu0 0.0
    %359 = vmatpush1.msra.mxu0 0.0
    %360 = vmatprep.subr.mxu0 0.0
    %361 = vmatpush1.msra.mxu0 0.0
    %362 = vmatprep.subr.mxu0 0.0
    %363 = vmatpush1.msra.mxu0 0.0
    %364 = vmatprep.subr.mxu0 0.0
    %365 = vmatpush1.msra.mxu0 0.0
    %366 = vmatprep.subr.mxu0 0.0
    %367 = vmatpush1.msra.mxu0 0.0
    %368 = vmatprep.subr.mxu0 0.0
    %369 = vmatpush1.msra.mxu0 0.0
    %370 = vmatprep.subr.mxu0 0.0
    %371 = vmatpush1.msra.mxu0 0.0
    %372 = vmatprep.subr.mxu0 0.0
    %373 = vmatpush1.msra.mxu0 0.0
    %374 = vmatprep.subr.mxu0 0.0
    %375 = vmatpush1.msra.mxu0 0.0
    %376 = vmatprep.subr.mxu0 0.0
    %377 = vmatpush1.msra.mxu0 0.0
    %378 = vmatprep.subr.mxu0 0.0
    %379 = vmatpush1.msra.mxu0 0.0
    %380 = vmatprep.subr.mxu0 0.0
    %381 = vmatpush1.msra.mxu0 0.0
    %382 = vmatprep.subr.mxu0 0.0
    %383 = vmatpush1.msra.mxu0 0.0
    %384 = vmatprep.subr.mxu0 0.0
    %385 = vmatpush1.msra.mxu0 0.0
    %386 = vmatprep.subr.mxu0 0.0
    %387 = vmatpush1.msra.mxu0 0.0
    %388 = vmatprep.subr.mxu0 0.0
    %389 = vmatpush1.msra.mxu0 0.0
    %390 = vmatprep.subr.mxu0 0.0
    %391 = vmatpush1.msra.mxu0 0.0
    %392 = vmatprep.subr.mxu0 0.0
    %393 = vmatpush1.msra.mxu0 0.0
    %394 = vmatprep.subr.mxu0 0.0
    %395 = vmatpush1.msra.mxu0 0.0
    %396 = vmatprep.subr.mxu0 0.0
    %397 = vmatpush1.msra.mxu0 0.0
    %398 = vmatprep.subr.mxu0 0.0
    %399 = vmatpush1.msra.mxu0 0.0
    %400 = vmatprep.subr.mxu0 0.0
    %401 = vmatpush1.msra.mxu0 0.0
    %402 = vmatprep.subr.mxu0 0.0
    %403 = vmatpush1.msra.mxu0 0.0
    %404 = vmatprep.subr.mxu0 0.0
    %405 = vmatpush1.msra.mxu0 0.0
    %406 = vmatprep.subr.mxu0 0.0
    %407 = vmatpush1.msra.mxu0 0.0
    %408 = vmatprep.mubr.f32.mxu0 0.0
    %v409 = vand.u32 %v49, 4294901760
    %v410 = vsub.f32 %v49, %v409
    %v411 = vand.u32 %v410, 4294901760
    %412 = vmatmul.mubr.f32.gmra.mrb[0].mxu0 %v411
    %v413 = vpop.f32.mrb[0].mxu0
    %v414 = vadd.f32 %v332, %v413
    %v415 = vpop.f32.mrb[0].mxu0
    %v416 = vadd.f32 %v334, %v415
    %417 = vdwg.mxu0
    %v418 = vand.u32 %v40, 4294901760
    %v419 = vsub.f32 %v40, %v418
    %v420 = vand.u32 %v419, 4294901760
    %421 = vmatprep.subr.mxu0 %v420
    %v422 = vand.u32 %v39, 4294901760
    %v423 = vsub.f32 %v39, %v422
    %v424 = vand.u32 %v423, 4294901760
    %425 = vmatpush1.msra.mxu0 %v424
    %v426 = vand.u32 %v42, 4294901760
    %v427 = vsub.f32 %v42, %v426
    %v428 = vand.u32 %v427, 4294901760
    %429 = vmatprep.subr.mxu0 %v428
    %v430 = vand.u32 %v41, 4294901760
    %v431 = vsub.f32 %v41, %v430
    %v432 = vand.u32 %v431, 4294901760
    %433 = vmatpush1.msra.mxu0 %v432
    %v434 = vand.u32 %v44, 4294901760
    %v435 = vsub.f32 %v44, %v434
    %v436 = vand.u32 %v435, 4294901760
    %437 = vmatprep.subr.mxu0 %v436
    %v438 = vand.u32 %v43, 4294901760
    %v439 = vsub.f32 %v43, %v438
    %v440 = vand.u32 %v439, 4294901760
    %441 = vmatpush1.msra.mxu0 %v440
    %v442 = vand.u32 %v46, 4294901760
    %v443 = vsub.f32 %v46, %v442
    %v444 = vand.u32 %v443, 4294901760
    %445 = vmatprep.subr.mxu0 %v444
    %v446 = vand.u32 %v45, 4294901760
    %v447 = vsub.f32 %v45, %v446
    %v448 = vand.u32 %v447, 4294901760
    %449 = vmatpush1.msra.mxu0 %v448
    %450 = vmatprep.subr.mxu0 0.0
    %451 = vmatpush1.msra.mxu0 0.0
    %452 = vmatprep.subr.mxu0 0.0
    %453 = vmatpush1.msra.mxu0 0.0
    %454 = vmatprep.subr.mxu0 0.0
    %455 = vmatpush1.msra.mxu0 0.0
    %456 = vmatprep.subr.mxu0 0.0
    %457 = vmatpush1.msra.mxu0 0.0
    %458 = vmatprep.subr.mxu0 0.0
    %459 = vmatpush1.msra.mxu0 0.0
    %460 = vmatprep.subr.mxu0 0.0
    %461 = vmatpush1.msra.mxu0 0.0
    %462 = vmatprep.subr.mxu0 0.0
    %463 = vmatpush1.msra.mxu0 0.0
    %464 = vmatprep.subr.mxu0 0.0
    %465 = vmatpush1.msra.mxu0 0.0
    %466 = vmatprep.subr.mxu0 0.0
    %467 = vmatpush1.msra.mxu0 0.0
    %468 = vmatprep.subr.mxu0 0.0
    %469 = vmatpush1.msra.mxu0 0.0
    %470 = vmatprep.subr.mxu0 0.0
    %471 = vmatpush1.msra.mxu0 0.0
    %472 = vmatprep.subr.mxu0 0.0
    %473 = vmatpush1.msra.mxu0 0.0
    %474 = vmatprep.subr.mxu0 0.0
    %475 = vmatpush1.msra.mxu0 0.0
    %476 = vmatprep.subr.mxu0 0.0
    %477 = vmatpush1.msra.mxu0 0.0
    %478 = vmatprep.subr.mxu0 0.0
    %479 = vmatpush1.msra.mxu0 0.0
    %480 = vmatprep.subr.mxu0 0.0
    %481 = vmatpush1.msra.mxu0 0.0
    %482 = vmatprep.subr.mxu0 0.0
    %483 = vmatpush1.msra.mxu0 0.0
    %484 = vmatprep.subr.mxu0 0.0
    %485 = vmatpush1.msra.mxu0 0.0
    %486 = vmatprep.subr.mxu0 0.0
    %487 = vmatpush1.msra.mxu0 0.0
    %488 = vmatprep.subr.mxu0 0.0
    %489 = vmatpush1.msra.mxu0 0.0
    %490 = vmatprep.subr.mxu0 0.0
    %491 = vmatpush1.msra.mxu0 0.0
    %492 = vmatprep.subr.mxu0 0.0
    %493 = vmatpush1.msra.mxu0 0.0
    %494 = vmatprep.subr.mxu0 0.0
    %495 = vmatpush1.msra.mxu0 0.0
    %496 = vmatprep.subr.mxu0 0.0
    %497 = vmatpush1.msra.mxu0 0.0
    %498 = vmatprep.subr.mxu0 0.0
    %499 = vmatpush1.msra.mxu0 0.0
    %500 = vmatprep.subr.mxu0 0.0
    %501 = vmatpush1.msra.mxu0 0.0
    %502 = vmatprep.subr.mxu0 0.0
    %503 = vmatpush1.msra.mxu0 0.0
    %504 = vmatprep.subr.mxu0 0.0
    %505 = vmatpush1.msra.mxu0 0.0
    %506 = vmatprep.mubr.f32.mxu0 0.0
    %v507 = vand.u32 %v49, 4294901760
    %508 = vmatmul.mubr.f32.gmra.mrb[0].mxu0 %v507
    %v509 = vpop.f32.mrb[0].mxu0
    %v510 = vadd.f32 %v414, %v509
    %v511 = vpop.f32.mrb[0].mxu0
    %v512 = vadd.f32 %v416, %v511
    %513 = vdwg.mxu0
    %v514 = vand.u32 %v40, 4294901760
    %515 = vmatprep.subr.mxu0 %v514
    %v516 = vand.u32 %v39, 4294901760
    %517 = vmatpush1.msra.mxu0 %v516
    %v518 = vand.u32 %v42, 4294901760
    %519 = vmatprep.subr.mxu0 %v518
    %v520 = vand.u32 %v41, 4294901760
    %521 = vmatpush1.msra.mxu0 %v520
    %v522 = vand.u32 %v44, 4294901760
    %523 = vmatprep.subr.mxu0 %v522
    %v524 = vand.u32 %v43, 4294901760
    %525 = vmatpush1.msra.mxu0 %v524
    %v526 = vand.u32 %v46, 4294901760
    %527 = vmatprep.subr.mxu0 %v526
    %v528 = vand.u32 %v45, 4294901760
    %529 = vmatpush1.msra.mxu0 %v528
    %530 = vmatprep.subr.mxu0 0.0
    %531 = vmatpush1.msra.mxu0 0.0
    %532 = vmatprep.subr.mxu0 0.0
    %533 = vmatpush1.msra.mxu0 0.0
    %534 = vmatprep.subr.mxu0 0.0
    %535 = vmatpush1.msra.mxu0 0.0
    %536 = vmatprep.subr.mxu0 0.0
    %537 = vmatpush1.msra.mxu0 0.0
    %538 = vmatprep.subr.mxu0 0.0
    %539 = vmatpush1.msra.mxu0 0.0
    %540 = vmatprep.subr.mxu0 0.0
    %541 = vmatpush1.msra.mxu0 0.0
    %542 = vmatprep.subr.mxu0 0.0
    %543 = vmatpush1.msra.mxu0 0.0
    %544 = vmatprep.subr.mxu0 0.0
    %545 = vmatpush1.msra.mxu0 0.0
    %546 = vmatprep.subr.mxu0 0.0
    %547 = vmatpush1.msra.mxu0 0.0
    %548 = vmatprep.subr.mxu0 0.0
    %549 = vmatpush1.msra.mxu0 0.0
    %550 = vmatprep.subr.mxu0 0.0
    %551 = vmatpush1.msra.mxu0 0.0
    %552 = vmatprep.subr.mxu0 0.0
    %553 = vmatpush1.msra.mxu0 0.0
    %554 = vmatprep.subr.mxu0 0.0
    %555 = vmatpush1.msra.mxu0 0.0
    %556 = vmatprep.subr.mxu0 0.0
    %557 = vmatpush1.msra.mxu0 0.0
    %558 = vmatprep.subr.mxu0 0.0
    %559 = vmatpush1.msra.mxu0 0.0
    %560 = vmatprep.subr.mxu0 0.0
    %561 = vmatpush1.msra.mxu0 0.0
    %562 = vmatprep.subr.mxu0 0.0
    %563 = vmatpush1.msra.mxu0 0.0
    %564 = vmatprep.subr.mxu0 0.0
    %565 = vmatpush1.msra.mxu0 0.0
    %566 = vmatprep.subr.mxu0 0.0
    %567 = vmatpush1.msra.mxu0 0.0
    %568 = vmatprep.subr.mxu0 0.0
    %569 = vmatpush1.msra.mxu0 0.0
    %570 = vmatprep.subr.mxu0 0.0
    %571 = vmatpush1.msra.mxu0 0.0
    %572 = vmatprep.subr.mxu0 0.0
    %573 = vmatpush1.msra.mxu0 0.0
    %574 = vmatprep.subr.mxu0 0.0
    %575 = vmatpush1.msra.mxu0 0.0
    %576 = vmatprep.subr.mxu0 0.0
    %577 = vmatpush1.msra.mxu0 0.0
    %578 = vmatprep.subr.mxu0 0.0
    %579 = vmatpush1.msra.mxu0 0.0
    %580 = vmatprep.subr.mxu0 0.0
    %581 = vmatpush1.msra.mxu0 0.0
    %582 = vmatprep.subr.mxu0 0.0
    %583 = vmatpush1.msra.mxu0 0.0
    %584 = vmatprep.subr.mxu0 0.0
    %585 = vmatpush1.msra.mxu0 0.0
    %586 = vmatprep.mubr.f32.mxu0 0.0
    %v587 = vand.u32 %v49, 4294901760
    %588 = vmatmul.mubr.f32.gmra.mrb[0].mxu0 %v587
    %v589 = vpop.f32.mrb[0].mxu0
    %v590 = vadd.f32 %v510, %v589
    %v591 = vpop.f32.mrb[0].mxu0
    %v592 = vadd.f32 %v512, %v591
    %593 = vdwg.mxu0
    %v594 = vld [vmem:[%s3] sm:$0xff]
    %v595 = vld [vmem:[%s3 + $0x8] sm:$0xff]
    %v596 = vld [vmem:[%s3 + $0x10] sm:$0xff]
    %v597 = vld [vmem:[%s3 + $0x18] sm:$0xff]
    %v598 = vld [vmem:[%s3 + $0x20] sm:$0xff]
    %v599 = vld [vmem:[%s3 + $0x28] sm:$0xff]
    %v600 = vld [vmem:[%s3 + $0x30] sm:$0xff]
    %v601 = vld [vmem:[%s3 + $0x38] sm:$0xff]
    %v603 = vsel %vm47, %v38, 0
    %v605 = vand.u32 %v595, 4294901760
    %606 = vmatprep.subr.mxu0 %v605
    %v607 = vand.u32 %v594, 4294901760
    %608 = vmatpush1.msra.mxu0 %v607
    %v609 = vand.u32 %v597, 4294901760
    %610 = vmatprep.subr.mxu0 %v609
    %v611 = vand.u32 %v596, 4294901760
    %612 = vmatpush1.msra.mxu0 %v611
    %v613 = vand.u32 %v599, 4294901760
    %614 = vmatprep.subr.mxu0 %v613
    %v615 = vand.u32 %v598, 4294901760
    %616 = vmatpush1.msra.mxu0 %v615
    %v617 = vand.u32 %v601, 4294901760
    %618 = vmatprep.subr.mxu0 %v617
    %v619 = vand.u32 %v600, 4294901760
    %620 = vmatpush1.msra.mxu0 %v619
    %621 = vmatprep.subr.mxu0 0.0
    %622 = vmatpush1.msra.mxu0 0.0
    %623 = vmatprep.subr.mxu0 0.0
    %624 = vmatpush1.msra.mxu0 0.0
    %625 = vmatprep.subr.mxu0 0.0
    %626 = vmatpush1.msra.mxu0 0.0
    %627 = vmatprep.subr.mxu0 0.0
    %628 = vmatpush1.msra.mxu0 0.0
    %629 = vmatprep.subr.mxu0 0.0
    %630 = vmatpush1.msra.mxu0 0.0
    %631 = vmatprep.subr.mxu0 0.0
    %632 = vmatpush1.msra.mxu0 0.0
    %633 = vmatprep.subr.mxu0 0.0
    %634 = vmatpush1.msra.mxu0 0.0
    %635 = vmatprep.subr.mxu0 0.0
    %636 = vmatpush1.msra.mxu0 0.0
    %637 = vmatprep.subr.mxu0 0.0
    %638 = vmatpush1.msra.mxu0 0.0
    %639 = vmatprep.subr.mxu0 0.0
    %640 = vmatpush1.msra.mxu0 0.0
    %641 = vmatprep.subr.mxu0 0.0
    %642 = vmatpush1.msra.mxu0 0.0
    %643 = vmatprep.subr.mxu0 0.0
    %644 = vmatpush1.msra.mxu0 0.0
    %645 = vmatprep.subr.mxu0 0.0
    %646 = vmatpush1.msra.mxu0 0.0
    %647 = vmatprep.subr.mxu0 0.0
    %648 = vmatpush1.msra.mxu0 0.0
    %649 = vmatprep.subr.mxu0 0.0
    %650 = vmatpush1.msra.mxu0 0.0
    %651 = vmatprep.subr.mxu0 0.0
    %652 = vmatpush1.msra.mxu0 0.0
    %653 = vmatprep.subr.mxu0 0.0
    %654 = vmatpush1.msra.mxu0 0.0
    %655 = vmatprep.subr.mxu0 0.0
    %656 = vmatpush1.msra.mxu0 0.0
    %657 = vmatprep.subr.mxu0 0.0
    %658 = vmatpush1.msra.mxu0 0.0
    %659 = vmatprep.subr.mxu0 0.0
    %660 = vmatpush1.msra.mxu0 0.0
    %661 = vmatprep.subr.mxu0 0.0
    %662 = vmatpush1.msra.mxu0 0.0
    %663 = vmatprep.subr.mxu0 0.0
    %664 = vmatpush1.msra.mxu0 0.0
    %665 = vmatprep.subr.mxu0 0.0
    %666 = vmatpush1.msra.mxu0 0.0
    %667 = vmatprep.subr.mxu0 0.0
    %668 = vmatpush1.msra.mxu0 0.0
    %669 = vmatprep.subr.mxu0 0.0
    %670 = vmatpush1.msra.mxu0 0.0
    %671 = vmatprep.subr.mxu0 0.0
    %672 = vmatpush1.msra.mxu0 0.0
    %673 = vmatprep.subr.mxu0 0.0
    %674 = vmatpush1.msra.mxu0 0.0
    %675 = vmatprep.subr.mxu0 0.0
    %676 = vmatpush1.msra.mxu0 0.0
    %677 = vmatprep.mubr.f32.mxu0 0.0
    %v678 = vand.u32 %v603, 4294901760
    %v679 = vsub.f32 %v603, %v678
    %v680 = vand.u32 %v679, 4294901760
    %v681 = vsub.f32 %v679, %v680
    %v682 = vand.u32 %v681, 4294901760
    %683 = vmatmul.mubr.f32.gmra.mrb[0].mxu0 %v682
    %v684 = vpop.f32.mrb[0].mxu0
    %v685 = vadd.f32 0.0, %v684
    %v686 = vpop.f32.mrb[0].mxu0
    %v687 = vadd.f32 0.0, %v686
    %688 = vdwg.mxu0
    %v689 = vand.u32 %v595, 4294901760
    %v690 = vsub.f32 %v595, %v689
    %v691 = vand.u32 %v690, 4294901760
    %v692 = vsub.f32 %v690, %v691
    %v693 = vand.u32 %v692, 4294901760
    %694 = vmatprep.subr.mxu0 %v693
    %v695 = vand.u32 %v594, 4294901760
    %v696 = vsub.f32 %v594, %v695
    %v697 = vand.u32 %v696, 4294901760
    %v698 = vsub.f32 %v696, %v697
    %v699 = vand.u32 %v698, 4294901760
    %700 = vmatpush1.msra.mxu0 %v699
    %v701 = vand.u32 %v597, 4294901760
    %v702 = vsub.f32 %v597, %v701
    %v703 = vand.u32 %v702, 4294901760
    %v704 = vsub.f32 %v702, %v703
    %v705 = vand.u32 %v704, 4294901760
    %706 = vmatprep.subr.mxu0 %v705
    %v707 = vand.u32 %v596, 4294901760
    %v708 = vsub.f32 %v596, %v707
    %v709 = vand.u32 %v708, 4294901760
    %v710 = vsub.f32 %v708, %v709
    %v711 = vand.u32 %v710, 4294901760
    %712 = vmatpush1.msra.mxu0 %v711
    %v713 = vand.u32 %v599, 4294901760
    %v714 = vsub.f32 %v599, %v713
    %v715 = vand.u32 %v714, 4294901760
    %v716 = vsub.f32 %v714, %v715
    %v717 = vand.u32 %v716, 4294901760
    %718 = vmatprep.subr.mxu0 %v717
    %v719 = vand.u32 %v598, 4294901760
    %v720 = vsub.f32 %v598, %v719
    %v721 = vand.u32 %v720, 4294901760
    %v722 = vsub.f32 %v720, %v721
    %v723 = vand.u32 %v722, 4294901760
    %724 = vmatpush1.msra.mxu0 %v723
    %v725 = vand.u32 %v601, 4294901760
    %v726 = vsub.f32 %v601, %v725
    %v727 = vand.u32 %v726, 4294901760
    %v728 = vsub.f32 %v726, %v727
    %v729 = vand.u32 %v728, 4294901760
    %730 = vmatprep.subr.mxu0 %v729
    %v731 = vand.u32 %v600, 4294901760
    %v732 = vsub.f32 %v600, %v731
    %v733 = vand.u32 %v732, 4294901760
    %v734 = vsub.f32 %v732, %v733
    %v735 = vand.u32 %v734, 4294901760
    %736 = vmatpush1.msra.mxu0 %v735
    %737 = vmatprep.subr.mxu0 0.0
    %738 = vmatpush1.msra.mxu0 0.0
    %739 = vmatprep.subr.mxu0 0.0
    %740 = vmatpush1.msra.mxu0 0.0
    %741 = vmatprep.subr.mxu0 0.0
    %742 = vmatpush1.msra.mxu0 0.0
    %743 = vmatprep.subr.mxu0 0.0
    %744 = vmatpush1.msra.mxu0 0.0
    %745 = vmatprep.subr.mxu0 0.0
    %746 = vmatpush1.msra.mxu0 0.0
    %747 = vmatprep.subr.mxu0 0.0
    %748 = vmatpush1.msra.mxu0 0.0
    %749 = vmatprep.subr.mxu0 0.0
    %750 = vmatpush1.msra.mxu0 0.0
    %751 = vmatprep.subr.mxu0 0.0
    %752 = vmatpush1.msra.mxu0 0.0
    %753 = vmatprep.subr.mxu0 0.0
    %754 = vmatpush1.msra.mxu0 0.0
    %755 = vmatprep.subr.mxu0 0.0
    %756 = vmatpush1.msra.mxu0 0.0
    %757 = vmatprep.subr.mxu0 0.0
    %758 = vmatpush1.msra.mxu0 0.0
    %759 = vmatprep.subr.mxu0 0.0
    %760 = vmatpush1.msra.mxu0 0.0
    %761 = vmatprep.subr.mxu0 0.0
    %762 = vmatpush1.msra.mxu0 0.0
    %763 = vmatprep.subr.mxu0 0.0
    %764 = vmatpush1.msra.mxu0 0.0
    %765 = vmatprep.subr.mxu0 0.0
    %766 = vmatpush1.msra.mxu0 0.0
    %767 = vmatprep.subr.mxu0 0.0
    %768 = vmatpush1.msra.mxu0 0.0
    %769 = vmatprep.subr.mxu0 0.0
    %770 = vmatpush1.msra.mxu0 0.0
    %771 = vmatprep.subr.mxu0 0.0
    %772 = vmatpush1.msra.mxu0 0.0
    %773 = vmatprep.subr.mxu0 0.0
    %774 = vmatpush1.msra.mxu0 0.0
    %775 = vmatprep.subr.mxu0 0.0
    %776 = vmatpush1.msra.mxu0 0.0
    %777 = vmatprep.subr.mxu0 0.0
    %778 = vmatpush1.msra.mxu0 0.0
    %779 = vmatprep.subr.mxu0 0.0
    %780 = vmatpush1.msra.mxu0 0.0
    %781 = vmatprep.subr.mxu0 0.0
    %782 = vmatpush1.msra.mxu0 0.0
    %783 = vmatprep.subr.mxu0 0.0
    %784 = vmatpush1.msra.mxu0 0.0
    %785 = vmatprep.subr.mxu0 0.0
    %786 = vmatpush1.msra.mxu0 0.0
    %787 = vmatprep.subr.mxu0 0.0
    %788 = vmatpush1.msra.mxu0 0.0
    %789 = vmatprep.subr.mxu0 0.0
    %790 = vmatpush1.msra.mxu0 0.0
    %791 = vmatprep.subr.mxu0 0.0
    %792 = vmatpush1.msra.mxu0 0.0
    %793 = vmatprep.mubr.f32.mxu0 0.0
    %v794 = vand.u32 %v603, 4294901760
    %795 = vmatmul.mubr.f32.gmra.mrb[0].mxu0 %v794
    %v796 = vpop.f32.mrb[0].mxu0
    %v797 = vadd.f32 %v685, %v796
    %v798 = vpop.f32.mrb[0].mxu0
    %v799 = vadd.f32 %v687, %v798
    %800 = vdwg.mxu0
    %v801 = vand.u32 %v595, 4294901760
    %v802 = vsub.f32 %v595, %v801
    %803 = vmatprep.subr.mxu0 %v802
    %v804 = vand.u32 %v594, 4294901760
    %v805 = vsub.f32 %v594, %v804
    %806 = vmatpush1.msra.mxu0 %v805
    %v807 = vand.u32 %v597, 4294901760
    %v808 = vsub.f32 %v597, %v807
    %809 = vmatprep.subr.mxu0 %v808
    %v810 = vand.u32 %v596, 4294901760
    %v811 = vsub.f32 %v596, %v810
    %812 = vmatpush1.msra.mxu0 %v811
    %v813 = vand.u32 %v599, 4294901760
    %v814 = vsub.f32 %v599, %v813
    %815 = vmatprep.subr.mxu0 %v814
    %v816 = vand.u32 %v598, 4294901760
    %v817 = vsub.f32 %v598, %v816
    %818 = vmatpush1.msra.mxu0 %v817
    %v819 = vand.u32 %v601, 4294901760
    %v820 = vsub.f32 %v601, %v819
    %821 = vmatprep.subr.mxu0 %v820
    %v822 = vand.u32 %v600, 4294901760
    %v823 = vsub.f32 %v600, %v822
    %824 = vmatpush1.msra.mxu0 %v823
    %825 = vmatprep.subr.mxu0 0.0
    %826 = vmatpush1.msra.mxu0 0.0
    %827 = vmatprep.subr.mxu0 0.0
    %828 = vmatpush1.msra.mxu0 0.0
    %829 = vmatprep.subr.mxu0 0.0
    %830 = vmatpush1.msra.mxu0 0.0
    %831 = vmatprep.subr.mxu0 0.0
    %832 = vmatpush1.msra.mxu0 0.0
    %833 = vmatprep.subr.mxu0 0.0
    %834 = vmatpush1.msra.mxu0 0.0
    %835 = vmatprep.subr.mxu0 0.0
    %836 = vmatpush1.msra.mxu0 0.0
    %837 = vmatprep.subr.mxu0 0.0
    %838 = vmatpush1.msra.mxu0 0.0
    %839 = vmatprep.subr.mxu0 0.0
    %840 = vmatpush1.msra.mxu0 0.0
    %841 = vmatprep.subr.mxu0 0.0
    %842 = vmatpush1.msra.mxu0 0.0
    %843 = vmatprep.subr.mxu0 0.0
    %844 = vmatpush1.msra.mxu0 0.0
    %845 = vmatprep.subr.mxu0 0.0
    %846 = vmatpush1.msra.mxu0 0.0
    %847 = vmatprep.subr.mxu0 0.0
    %848 = vmatpush1.msra.mxu0 0.0
    %849 = vmatprep.subr.mxu0 0.0
    %850 = vmatpush1.msra.mxu0 0.0
    %851 = vmatprep.subr.mxu0 0.0
    %852 = vmatpush1.msra.mxu0 0.0
    %853 = vmatprep.subr.mxu0 0.0
    %854 = vmatpush1.msra.mxu0 0.0
    %855 = vmatprep.subr.mxu0 0.0
    %856 = vmatpush1.msra.mxu0 0.0
    %857 = vmatprep.subr.mxu0 0.0
    %858 = vmatpush1.msra.mxu0 0.0
    %859 = vmatprep.subr.mxu0 0.0
    %860 = vmatpush1.msra.mxu0 0.0
    %861 = vmatprep.subr.mxu0 0.0
    %862 = vmatpush1.msra.mxu0 0.0
    %863 = vmatprep.subr.mxu0 0.0
    %864 = vmatpush1.msra.mxu0 0.0
    %865 = vmatprep.subr.mxu0 0.0
    %866 = vmatpush1.msra.mxu0 0.0
    %867 = vmatprep.subr.mxu0 0.0
    %868 = vmatpush1.msra.mxu0 0.0
    %869 = vmatprep.subr.mxu0 0.0
    %870 = vmatpush1.msra.mxu0 0.0
    %871 = vmatprep.subr.mxu0 0.0
    %872 = vmatpush1.msra.mxu0 0.0
    %873 = vmatprep.subr.mxu0 0.0
    %874 = vmatpush1.msra.mxu0 0.0
    %875 = vmatprep.subr.mxu0 0.0
    %876 = vmatpush1.msra.mxu0 0.0
    %877 = vmatprep.subr.mxu0 0.0
    %878 = vmatpush1.msra.mxu0 0.0
    %879 = vmatprep.subr.mxu0 0.0
    %880 = vmatpush1.msra.mxu0 0.0
    %881 = vmatprep.mubr.f32.mxu0 0.0
    %v882 = vand.u32 %v603, 4294901760
    %v883 = vsub.f32 %v603, %v882
    %884 = vmatmul.mubr.f32.gmra.mrb[0].mxu0 %v883
    %v885 = vpop.f32.mrb[0].mxu0
    %v886 = vadd.f32 %v797, %v885
    %v887 = vpop.f32.mrb[0].mxu0
    %v888 = vadd.f32 %v799, %v887
    %889 = vdwg.mxu0
    %v890 = vand.u32 %v595, 4294901760
    %891 = vmatprep.subr.mxu0 %v890
    %v892 = vand.u32 %v594, 4294901760
    %893 = vmatpush1.msra.mxu0 %v892
    %v894 = vand.u32 %v597, 4294901760
    %895 = vmatprep.subr.mxu0 %v894
    %v896 = vand.u32 %v596, 4294901760
    %897 = vmatpush1.msra.mxu0 %v896
    %v898 = vand.u32 %v599, 4294901760
    %899 = vmatprep.subr.mxu0 %v898
    %v900 = vand.u32 %v598, 4294901760
    %901 = vmatpush1.msra.mxu0 %v900
    %v902 = vand.u32 %v601, 4294901760
    %903 = vmatprep.subr.mxu0 %v902
    %v904 = vand.u32 %v600, 4294901760
    %905 = vmatpush1.msra.mxu0 %v904
    %906 = vmatprep.subr.mxu0 0.0
    %907 = vmatpush1.msra.mxu0 0.0
    %908 = vmatprep.subr.mxu0 0.0
    %909 = vmatpush1.msra.mxu0 0.0
    %910 = vmatprep.subr.mxu0 0.0
    %911 = vmatpush1.msra.mxu0 0.0
    %912 = vmatprep.subr.mxu0 0.0
    %913 = vmatpush1.msra.mxu0 0.0
    %914 = vmatprep.subr.mxu0 0.0
    %915 = vmatpush1.msra.mxu0 0.0
    %916 = vmatprep.subr.mxu0 0.0
    %917 = vmatpush1.msra.mxu0 0.0
    %918 = vmatprep.subr.mxu0 0.0
    %919 = vmatpush1.msra.mxu0 0.0
    %920 = vmatprep.subr.mxu0 0.0
    %921 = vmatpush1.msra.mxu0 0.0
    %922 = vmatprep.subr.mxu0 0.0
    %923 = vmatpush1.msra.mxu0 0.0
    %924 = vmatprep.subr.mxu0 0.0
    %925 = vmatpush1.msra.mxu0 0.0
    %926 = vmatprep.subr.mxu0 0.0
    %927 = vmatpush1.msra.mxu0 0.0
    %928 = vmatprep.subr.mxu0 0.0
    %929 = vmatpush1.msra.mxu0 0.0
    %930 = vmatprep.subr.mxu0 0.0
    %931 = vmatpush1.msra.mxu0 0.0
    %932 = vmatprep.subr.mxu0 0.0
    %933 = vmatpush1.msra.mxu0 0.0
    %934 = vmatprep.subr.mxu0 0.0
    %935 = vmatpush1.msra.mxu0 0.0
    %936 = vmatprep.subr.mxu0 0.0
    %937 = vmatpush1.msra.mxu0 0.0
    %938 = vmatprep.subr.mxu0 0.0
    %939 = vmatpush1.msra.mxu0 0.0
    %940 = vmatprep.subr.mxu0 0.0
    %941 = vmatpush1.msra.mxu0 0.0
    %942 = vmatprep.subr.mxu0 0.0
    %943 = vmatpush1.msra.mxu0 0.0
    %944 = vmatprep.subr.mxu0 0.0
    %945 = vmatpush1.msra.mxu0 0.0
    %946 = vmatprep.subr.mxu0 0.0
    %947 = vmatpush1.msra.mxu0 0.0
    %948 = vmatprep.subr.mxu0 0.0
    %949 = vmatpush1.msra.mxu0 0.0
    %950 = vmatprep.subr.mxu0 0.0
    %951 = vmatpush1.msra.mxu0 0.0
    %952 = vmatprep.subr.mxu0 0.0
    %953 = vmatpush1.msra.mxu0 0.0
    %954 = vmatprep.subr.mxu0 0.0
    %955 = vmatpush1.msra.mxu0 0.0
    %956 = vmatprep.subr.mxu0 0.0
    %957 = vmatpush1.msra.mxu0 0.0
    %958 = vmatprep.subr.mxu0 0.0
    %959 = vmatpush1.msra.mxu0 0.0
    %960 = vmatprep.subr.mxu0 0.0
    %961 = vmatpush1.msra.mxu0 0.0
    %962 = vmatprep.mubr.f32.mxu0 0.0
    %v963 = vand.u32 %v603, 4294901760
    %v964 = vsub.f32 %v603, %v963
    %v965 = vand.u32 %v964, 4294901760
    %966 = vmatmul.mubr.f32.gmra.mrb[0].mxu0 %v965
    %v967 = vpop.f32.mrb[0].mxu0
    %v968 = vadd.f32 %v886, %v967
    %v969 = vpop.f32.mrb[0].mxu0
    %v970 = vadd.f32 %v888, %v969
    %971 = vdwg.mxu0
    %v972 = vand.u32 %v595, 4294901760
    %v973 = vsub.f32 %v595, %v972
    %v974 = vand.u32 %v973, 4294901760
    %975 = vmatprep.subr.mxu0 %v974
    %v976 = vand.u32 %v594, 4294901760
    %v977 = vsub.f32 %v594, %v976
    %v978 = vand.u32 %v977, 4294901760
    %979 = vmatpush1.msra.mxu0 %v978
    %v980 = vand.u32 %v597, 4294901760
    %v981 = vsub.f32 %v597, %v980
    %v982 = vand.u32 %v981, 4294901760
    %983 = vmatprep.subr.mxu0 %v982
    %v984 = vand.u32 %v596, 4294901760
    %v985 = vsub.f32 %v596, %v984
    %v986 = vand.u32 %v985, 4294901760
    %987 = vmatpush1.msra.mxu0 %v986
    %v988 = vand.u32 %v599, 4294901760
    %v989 = vsub.f32 %v599, %v988
    %v990 = vand.u32 %v989, 4294901760
    %991 = vmatprep.subr.mxu0 %v990
    %v992 = vand.u32 %v598, 4294901760
    %v993 = vsub.f32 %v598, %v992
    %v994 = vand.u32 %v993, 4294901760
    %995 = vmatpush1.msra.mxu0 %v994
    %v996 = vand.u32 %v601, 4294901760
    %v997 = vsub.f32 %v601, %v996
    %v998 = vand.u32 %v997, 4294901760
    %999 = vmatprep.subr.mxu0 %v998
    %v1000 = vand.u32 %v600, 4294901760
    %v1001 = vsub.f32 %v600, %v1000
    %v1002 = vand.u32 %v1001, 4294901760
    %1003 = vmatpush1.msra.mxu0 %v1002
    %1004 = vmatprep.subr.mxu0 0.0
    %1005 = vmatpush1.msra.mxu0 0.0
    %1006 = vmatprep.subr.mxu0 0.0
    %1007 = vmatpush1.msra.mxu0 0.0
    %1008 = vmatprep.subr.mxu0 0.0
    %1009 = vmatpush1.msra.mxu0 0.0
    %1010 = vmatprep.subr.mxu0 0.0
    %1011 = vmatpush1.msra.mxu0 0.0
    %1012 = vmatprep.subr.mxu0 0.0
    %1013 = vmatpush1.msra.mxu0 0.0
    %1014 = vmatprep.subr.mxu0 0.0
    %1015 = vmatpush1.msra.mxu0 0.0
    %1016 = vmatprep.subr.mxu0 0.0
    %1017 = vmatpush1.msra.mxu0 0.0
    %1018 = vmatprep.subr.mxu0 0.0
    %1019 = vmatpush1.msra.mxu0 0.0
    %1020 = vmatprep.subr.mxu0 0.0
    %1021 = vmatpush1.msra.mxu0 0.0
    %1022 = vmatprep.subr.mxu0 0.0
    %1023 = vmatpush1.msra.mxu0 0.0
    %1024 = vmatprep.subr.mxu0 0.0
    %1025 = vmatpush1.msra.mxu0 0.0
    %1026 = vmatprep.subr.mxu0 0.0
    %1027 = vmatpush1.msra.mxu0 0.0
    %1028 = vmatprep.subr.mxu0 0.0
    %1029 = vmatpush1.msra.mxu0 0.0
    %1030 = vmatprep.subr.mxu0 0.0
    %1031 = vmatpush1.msra.mxu0 0.0
    %1032 = vmatprep.subr.mxu0 0.0
    %1033 = vmatpush1.msra.mxu0 0.0
    %1034 = vmatprep.subr.mxu0 0.0
    %1035 = vmatpush1.msra.mxu0 0.0
    %1036 = vmatprep.subr.mxu0 0.0
    %1037 = vmatpush1.msra.mxu0 0.0
    %1038 = vmatprep.subr.mxu0 0.0
    %1039 = vmatpush1.msra.mxu0 0.0
    %1040 = vmatprep.subr.mxu0 0.0
    %1041 = vmatpush1.msra.mxu0 0.0
    %1042 = vmatprep.subr.mxu0 0.0
    %1043 = vmatpush1.msra.mxu0 0.0
    %1044 = vmatprep.subr.mxu0 0.0
    %1045 = vmatpush1.msra.mxu0 0.0
    %1046 = vmatprep.subr.mxu0 0.0
    %1047 = vmatpush1.msra.mxu0 0.0
    %1048 = vmatprep.subr.mxu0 0.0
    %1049 = vmatpush1.msra.mxu0 0.0
    %1050 = vmatprep.subr.mxu0 0.0
    %1051 = vmatpush1.msra.mxu0 0.0
    %1052 = vmatprep.subr.mxu0 0.0
    %1053 = vmatpush1.msra.mxu0 0.0
    %1054 = vmatprep.subr.mxu0 0.0
    %1055 = vmatpush1.msra.mxu0 0.0
    %1056 = vmatprep.subr.mxu0 0.0
    %1057 = vmatpush1.msra.mxu0 0.0
    %1058 = vmatprep.subr.mxu0 0.0
    %1059 = vmatpush1.msra.mxu0 0.0
    %1060 = vmatprep.mubr.f32.mxu0 0.0
    %v1061 = vand.u32 %v603, 4294901760
    %1062 = vmatmul.mubr.f32.gmra.mrb[0].mxu0 %v1061
    %v1063 = vpop.f32.mrb[0].mxu0
    %v1064 = vadd.f32 %v968, %v1063
    %v1065 = vpop.f32.mrb[0].mxu0
    %v1066 = vadd.f32 %v970, %v1065
    %1067 = vdwg.mxu0
    %v1068 = vand.u32 %v595, 4294901760
    %1069 = vmatprep.subr.mxu0 %v1068
    %v1070 = vand.u32 %v594, 4294901760
    %1071 = vmatpush1.msra.mxu0 %v1070
    %v1072 = vand.u32 %v597, 4294901760
    %1073 = vmatprep.subr.mxu0 %v1072
    %v1074 = vand.u32 %v596, 4294901760
    %1075 = vmatpush1.msra.mxu0 %v1074
    %v1076 = vand.u32 %v599, 4294901760
    %1077 = vmatprep.subr.mxu0 %v1076
    %v1078 = vand.u32 %v598, 4294901760
    %1079 = vmatpush1.msra.mxu0 %v1078
    %v1080 = vand.u32 %v601, 4294901760
    %1081 = vmatprep.subr.mxu0 %v1080
    %v1082 = vand.u32 %v600, 4294901760
    %1083 = vmatpush1.msra.mxu0 %v1082
    %1084 = vmatprep.subr.mxu0 0.0
    %1085 = vmatpush1.msra.mxu0 0.0
    %1086 = vmatprep.subr.mxu0 0.0
    %1087 = vmatpush1.msra.mxu0 0.0
    %1088 = vmatprep.subr.mxu0 0.0
    %1089 = vmatpush1.msra.mxu0 0.0
    %1090 = vmatprep.subr.mxu0 0.0
    %1091 = vmatpush1.msra.mxu0 0.0
    %1092 = vmatprep.subr.mxu0 0.0
    %1093 = vmatpush1.msra.mxu0 0.0
    %1094 = vmatprep.subr.mxu0 0.0
    %1095 = vmatpush1.msra.mxu0 0.0
    %1096 = vmatprep.subr.mxu0 0.0
    %1097 = vmatpush1.msra.mxu0 0.0
    %1098 = vmatprep.subr.mxu0 0.0
    %1099 = vmatpush1.msra.mxu0 0.0
    %1100 = vmatprep.subr.mxu0 0.0
    %1101 = vmatpush1.msra.mxu0 0.0
    %1102 = vmatprep.subr.mxu0 0.0
    %1103 = vmatpush1.msra.mxu0 0.0
    %1104 = vmatprep.subr.mxu0 0.0
    %1105 = vmatpush1.msra.mxu0 0.0
    %1106 = vmatprep.subr.mxu0 0.0
    %1107 = vmatpush1.msra.mxu0 0.0
    %1108 = vmatprep.subr.mxu0 0.0
    %1109 = vmatpush1.msra.mxu0 0.0
    %1110 = vmatprep.subr.mxu0 0.0
    %1111 = vmatpush1.msra.mxu0 0.0
    %1112 = vmatprep.subr.mxu0 0.0
    %1113 = vmatpush1.msra.mxu0 0.0
    %1114 = vmatprep.subr.mxu0 0.0
    %1115 = vmatpush1.msra.mxu0 0.0
    %1116 = vmatprep.subr.mxu0 0.0
    %1117 = vmatpush1.msra.mxu0 0.0
    %1118 = vmatprep.subr.mxu0 0.0
    %1119 = vmatpush1.msra.mxu0 0.0
    %1120 = vmatprep.subr.mxu0 0.0
    %1121 = vmatpush1.msra.mxu0 0.0
    %1122 = vmatprep.subr.mxu0 0.0
    %1123 = vmatpush1.msra.mxu0 0.0
    %1124 = vmatprep.subr.mxu0 0.0
    %1125 = vmatpush1.msra.mxu0 0.0
    %1126 = vmatprep.subr.mxu0 0.0
    %1127 = vmatpush1.msra.mxu0 0.0
    %1128 = vmatprep.subr.mxu0 0.0
    %1129 = vmatpush1.msra.mxu0 0.0
    %1130 = vmatprep.subr.mxu0 0.0
    %1131 = vmatpush1.msra.mxu0 0.0
    %1132 = vmatprep.subr.mxu0 0.0
    %1133 = vmatpush1.msra.mxu0 0.0
    %1134 = vmatprep.subr.mxu0 0.0
    %1135 = vmatpush1.msra.mxu0 0.0
    %1136 = vmatprep.subr.mxu0 0.0
    %1137 = vmatpush1.msra.mxu0 0.0
    %1138 = vmatprep.subr.mxu0 0.0
    %1139 = vmatpush1.msra.mxu0 0.0
    %1140 = vmatprep.mubr.f32.mxu0 0.0
    %v1141 = vand.u32 %v603, 4294901760
    %1142 = vmatmul.mubr.f32.gmra.mrb[0].mxu0 %v1141
    %v1143 = vpop.f32.mrb[0].mxu0
    %v1144 = vadd.f32 %v1064, %v1143
    %v1145 = vpop.f32.mrb[0].mxu0
    %v1146 = vadd.f32 %v1066, %v1145
    %1147 = vdwg.mxu0
    %v1148 = vmul.f32 %v590, %v1144
    %v1149 = vadd.f32 %v592, %v1146
    %v1150 = vld [vmem:[#allocation2] sm:$0x1]
    %v1152 = vlaneseq
    %v1153 = vshrl.u32 %v1152, 7
    %v1154 = vsub.s32 0, %v1153
    %v1155 = vrot.slane %v1150, %v1154
    %v1157 = vadd.f32 %v1149, %v1155
    %1158 = vadd.xlane.f32.xlu0 %v1148
    %v1159 = vpop.xlane.xlu0 %1158
    %v1160 = vadd.f32 %v1157, %v1159
    %vm1161 = vcmask 7168
    %1162 = vst.msk [vmem:[%s6] sm:$0xff] %vm1161, %v1160
    // Predicated region
    $region30: #{tpu_custom_call.1} parent=1 // pred_check
      _
    $region31: #{tpu_custom_call.1} parent=1 // pred_check_branch
      %1164 = sbr.rel (0) target = $region33
    $region32: #{tpu_custom_call.1} parent=1 // pred_region
      _
    $region33: #{tpu_custom_call.1} parent=1 // pred_fallthru
      _
    // Predicated region
    $region34: #{tpu_custom_call.1} parent=1 // pred_check
      _
    $region35: #{tpu_custom_call.1} parent=1 // pred_check_branch
      %1166 = sbr.rel (0) target = $region37
    $region36: #{tpu_custom_call.1} parent=1 // pred_region
      _
    $region37: #{tpu_custom_call.1} parent=1 // pred_fallthru
      _
    %1167 = vsyncpa [#allocation4], 1

</llo_original>
